<compile_context>
chip_gen: v7x
topology: tpu7x:2x2x1
jax: 0.10.0
libtpu: 0.0.40
codegen_flags: <defaults>
</compile_context>

<pallas_src>
import functools

import jax
import jax.numpy as jnp
import numpy as np
from jax import lax
from jax.experimental import pallas as pl
from jax.experimental.pallas import tpu as pltpu

_ACT_DTYPE = jnp.bfloat16  # inter-kernel activations / MXU operand dtype


# ---------------------------------------------------------------------------
# hardware-aware limits & tile-size helpers
# ---------------------------------------------------------------------------
@functools.lru_cache(maxsize=None)
def _vmem_limit_bytes():
    """Scoped-VMEM limit: half the physical VMEM, capped at 64 MiB."""
    default = 64 * 1024 * 1024
    try:
        cap = getattr(pltpu.get_tpu_info(), "vmem_capacity_bytes", 2 * default)
        return max(32 * 1024 * 1024, min(cap // 2, default))
    except Exception:
        return default


def _pick_spatial_tile(hw, cap=4096):
    """Largest multiple-of-128 divisor of hw that is <= cap (else full hw)."""
    cands = [d for d in range(128, min(hw, cap) + 1, 128) if hw % d == 0]
    return max(cands) if cands else hw


def _pick_channel_tile(c, hw, budget_bytes):
    """Largest multiple-of-8 divisor of c whose (c_tile, hw) f32 block fits."""
    cap = max(8, budget_bytes // (hw * 4))
    cands = [d for d in range(8, min(c, cap) + 1, 8) if c % d == 0]
    return max(cands) if cands else c


# ---------------------------------------------------------------------------
# Kernel 1: fused 1x1 qkv conv + depthwise 3x3 conv (padding=1).
# Grid = (B, 3C // CG); the (C, HW) input block is resident across channel
# groups (constant block index -> no re-DMA on consecutive steps).
# ---------------------------------------------------------------------------
def _dw_valid_masks(H, W):
    m = np.zeros((9, H, W), np.float32)
    for ky in range(3):
        for kx in range(3):
            dy, dx = ky - 1, kx - 1
            ys = slice(max(0, -dy), H - max(0, dy))
            xs = slice(max(0, -dx), W - max(0, dx))
            m[ky * 3 + kx, ys, xs] = 1.0
    return m.reshape(9, H * W)


def _qkv_dw_kernel(x_ref, wq_ref, bq_ref, wd_ref, bd_ref, msk_ref, o_ref, *, width):
    # 1x1 conv for this output-channel group: bf16 MXU operands, f32 accum.
    x = x_ref[...].astype(jnp.bfloat16)                                  # (C, HW)
    wq = wq_ref[...].astype(jnp.bfloat16)                                # (CG, C)
    y = jnp.dot(wq, x, preferred_element_type=jnp.float32) + bq_ref[...]  # (CG, HW) f32
    hw = y.shape[1]

    # Depthwise 3x3 with zero padding fused via precomputed validity masks.
    # Lane shifts use pltpu.roll (XLU slot, no concat copies); wrapped-around
    # lanes only ever land on mask-zeroed positions.
    acc = jnp.zeros_like(y)
    for ky in range(3):
        for kx in range(3):
            tap = ky * 3 + kx
            d = (ky - 1) * width + (kx - 1)
            shifted = y if d == 0 else pltpu.roll(y, shift=(-d) % hw, axis=1)
            w_tap = wd_ref[:, tap:tap + 1]                               # (CG, 1)
            if tap == 4:                                                 # center: mask is all ones
                acc = acc + shifted * w_tap
            else:
                acc = acc + (shifted * msk_ref[tap:tap + 1, :]) * w_tap
    o_ref[...] = (acc + bd_ref[...]).astype(o_ref.dtype)


def qkv_dwconv(x, w_qkv, b_qkv, w_dw, b_dw, H, W):
    # x: (B, C, HW) -> (B, 3C, HW) in bf16.
    B, C, HW = x.shape
    C3 = w_qkv.shape[0]
    CG = _pick_channel_tile(C3, HW, budget_bytes=_vmem_limit_bytes() // 8)
    # TODO(synk): for very large H*W add spatial halo tiling so the (C, HW)
    # and (CG, HW) blocks stay within VMEM; full-HW blocks are fine here.
    masks = jnp.asarray(_dw_valid_masks(H, W))                           # (9, HW)
    kernel = functools.partial(_qkv_dw_kernel, width=W)
    return pl.pallas_call(
        kernel,
        out_shape=jax.ShapeDtypeStruct((B, C3, HW), _ACT_DTYPE),
        grid=(B, C3 // CG),
        in_specs=[
            pl.BlockSpec((None, C, HW), lambda i, c: (i, 0, 0)),         # x (resident over c)
            pl.BlockSpec((CG, C), lambda i, c: (c, 0)),                  # w_qkv group
            pl.BlockSpec((CG, 1), lambda i, c: (c, 0)),                  # b_qkv group
            pl.BlockSpec((CG, 9), lambda i, c: (c, 0)),                  # w_dw group
            pl.BlockSpec((CG, 1), lambda i, c: (c, 0)),                  # b_dw group
            pl.BlockSpec((9, HW), lambda i, c: (0, 0)),                  # validity masks
        ],
        out_specs=pl.BlockSpec((None, CG, HW), lambda i, c: (i, c, 0)),
        compiler_params=pltpu.CompilerParams(
            dimension_semantics=("parallel", "parallel"),
            vmem_limit_bytes=_vmem_limit_bytes()),
    )(x, w_qkv, b_qkv.reshape(C3, 1), w_dw, b_dw.reshape(C3, 1), masks)


# ---------------------------------------------------------------------------
# Kernel 2: attention statistics + projection fold (per batch, all heads).
# Accumulates per-head gram(q,k) + squared L2 norms over HW tiles; the
# finalize step computes the softmax probabilities and immediately folds the
# output projection:  M[:, h*ch:(h+1)*ch] = W_proj[:, h*ch:(h+1)*ch] @ P[h].
# q and k are fetched with a single merged BlockSpec (block index 0/1 of the
# qkv axis).
# ---------------------------------------------------------------------------
def _attn_fold_kernel(temp_ref, wp_ref, qk_ref, m_ref, gram_ref, qss_ref, kss_ref):
    t_idx = pl.program_id(1)

    @pl.when(t_idx == 0)
    def _init():
        gram_ref[...] = jnp.zeros_like(gram_ref)
        qss_ref[...] = jnp.zeros_like(qss_ref)
        kss_ref[...] = jnp.zeros_like(kss_ref)

    q = qk_ref[0]                                                        # (NH, ch, T) bf16
    k = qk_ref[1]
    gram_ref[...] += jnp.einsum("hct,hdt->hcd", q, k,
                                preferred_element_type=jnp.float32)
    qf = q.astype(jnp.float32)
    kf = k.astype(jnp.float32)
    qss_ref[...] += jnp.sum(qf * qf, axis=2, keepdims=True)              # (NH, ch, 1)
    ones_row = jnp.ones((kf.shape[0], 1, kf.shape[2]), jnp.float32)
    kss_ref[...] += jnp.einsum("hot,hct->hoc", ones_row, kf * kf,
                               preferred_element_type=jnp.float32)       # (NH, 1, ch)

    @pl.when(t_idx == pl.num_programs(1) - 1)
    def _finalize():
        NH, ch, _ = gram_ref.shape
        eps2 = jnp.float32(1e-24)                                        # (torch normalize eps)^2
        q_inv = lax.rsqrt(jnp.maximum(qss_ref[...], eps2))               # (NH, ch, 1)
        k_inv = lax.rsqrt(jnp.maximum(kss_ref[...], eps2))               # (NH, 1, ch)
        a = gram_ref[...] * q_inv * k_inv * temp_ref[...]                # (NH, ch, ch)
        a = a - jnp.max(a, axis=-1, keepdims=True)
        e = jnp.exp(a)
        p = e * pl.reciprocal(jnp.sum(e, axis=-1, keepdims=True), approx=True)
        w = wp_ref[...]                                                  # (C, C) f32
        for h in range(NH):
            blk = jnp.dot(w[:, h * ch:(h + 1) * ch], p[h],
                          preferred_element_type=jnp.float32)            # (C, ch)
            m_ref[:, h * ch:(h + 1) * ch] = blk.astype(m_ref.dtype)


def attention_fold(qkv5, temperature, w_proj):
    # qkv5: (B, 3, NH, ch, HW) -> folded attention+projection M: (B, C, C).
    B, _, NH, ch, HW = qkv5.shape
    C = NH * ch
    T = _pick_spatial_tile(HW)
    return pl.pallas_call(
        _attn_fold_kernel,
        out_shape=jax.ShapeDtypeStruct((B, C, C), _ACT_DTYPE),
        grid=(B, HW // T),
        in_specs=[
            pl.BlockSpec((NH, 1, 1), lambda i, t: (0, 0, 0)),                   # temperature
            pl.BlockSpec((C, C), lambda i, t: (0, 0)),                          # W_proj
            pl.BlockSpec((None, 2, NH, ch, T), lambda i, t: (i, 0, 0, 0, t)),   # q & k merged
        ],
        out_specs=pl.BlockSpec((None, C, C), lambda i, t: (i, 0, 0)),
        scratch_shapes=[
            pltpu.VMEM((NH, ch, ch), jnp.float32),
            pltpu.VMEM((NH, ch, 1), jnp.float32),
            pltpu.VMEM((NH, 1, ch), jnp.float32),
        ],
        compiler_params=pltpu.CompilerParams(
            dimension_semantics=("parallel", "arbitrary"),
            vmem_limit_bytes=_vmem_limit_bytes()),
    )(temperature, w_proj, qkv5)


# ---------------------------------------------------------------------------
# Kernel 3: fused attention-apply + output projection:
#   out_tile = M_b @ v_tile + b_proj   (single (C,C)@(C,T) MXU matmul).
# ---------------------------------------------------------------------------
def _apply_proj_kernel(m_ref, bp_ref, v_ref, o_ref):
    out = jnp.dot(m_ref[...], v_ref[...], preferred_element_type=jnp.float32)
    o_ref[...] = (out + bp_ref[...]).astype(o_ref.dtype)


def attention_apply_proj(m, qkv, b_proj, out_dtype):
    # m: (B, C, C) bf16; qkv: (B, 3C, HW) bf16 (v = channel block index 2).
    B, C, _ = m.shape
    HW = qkv.shape[2]
    T = _pick_spatial_tile(HW)
    return pl.pallas_call(
        _apply_proj_kernel,
        out_shape=jax.ShapeDtypeStruct((B, C, HW), out_dtype),
        grid=(B, HW // T),
        in_specs=[
            pl.BlockSpec((None, C, C), lambda i, t: (i, 0, 0)),          # folded attn+proj
            pl.BlockSpec((C, 1), lambda i, t: (0, 0)),                   # proj bias
            pl.BlockSpec((None, C, T), lambda i, t: (i, 2, t)),          # v rows of qkv
        ],
        out_specs=pl.BlockSpec((None, C, T), lambda i, t: (i, 0, t)),
        compiler_params=pltpu.CompilerParams(
            dimension_semantics=("parallel", "parallel"),
            vmem_limit_bytes=_vmem_limit_bytes()),
    )(m, b_proj.reshape(C, 1), qkv)


# ---------------------------------------------------------------------------
# Parameter init (deterministic, synthetic) and forward wrapper
# ---------------------------------------------------------------------------
def init_params(key, dim, num_heads):
    ks = jax.random.split(key, 6)
    s = 0.1
    return dict(
        temperature=jnp.ones((num_heads, 1, 1), jnp.float32),
        w_qkv=jax.random.normal(ks[0], (dim * 3, dim), jnp.float32) * s,   # (out, in)
        b_qkv=jax.random.normal(ks[1], (dim * 3,), jnp.float32) * s,
        w_dw=jax.random.normal(ks[2], (dim * 3, 9), jnp.float32) * s,      # tap = ky*3+kx
        b_dw=jax.random.normal(ks[3], (dim * 3,), jnp.float32) * s,
        w_proj=jax.random.normal(ks[4], (dim, dim), jnp.float32) * s,
        b_proj=jax.random.normal(ks[5], (dim,), jnp.float32) * s,
    )


def attention_forward(params, x, num_heads):
    # x: (B, C, H, W) NCHW like PyTorch.  All reshapes below are free
    # (contiguous); there are no wrapper transposes anywhere.
    B, C, H, W = x.shape
    HW = H * W
    ch = C // num_heads

    xf = x.reshape(B, C, HW)                                              # (B, C, HW)
    qkv = qkv_dwconv(xf, params["w_qkv"], params["b_qkv"],
                     params["w_dw"], params["b_dw"], H, W)                # (B, 3C, HW) bf16
    qkv5 = qkv.reshape(B, 3, num_heads, ch, HW)                           # free reshape
    m = attention_fold(qkv5, params["temperature"], params["w_proj"])     # (B, C, C) bf16
    out = attention_apply_proj(m, qkv, params["b_proj"], x.dtype)         # (B, C, HW) f32
    return out.reshape(B, C, H, W)


# ---------------------------------------------------------------------------
# Pure-JAX reference (mirrors the PyTorch forward) for the correctness check
# ---------------------------------------------------------------------------
def reference_forward(params, x, num_heads):
    B, C, H, W = x.shape
    HW = H * W
    ch = C // num_heads
    xf = x.reshape(B, C, HW)
    qkv = jnp.einsum("oc,bcn->bon", params["w_qkv"], xf) + params["b_qkv"][None, :, None]
    q4 = qkv.reshape(B, 3 * C, H, W)
    qp = jnp.pad(q4, ((0, 0), (0, 0), (1, 1), (1, 1)))
    wd = params["w_dw"].reshape(3 * C, 3, 3)
    acc = jnp.zeros_like(q4)
    for ky in range(3):
        for kx in range(3):
            acc = acc + qp[:, :, ky:ky + H, kx:kx + W] * wd[None, :, ky, kx, None, None]
    qkv = (acc + params["b_dw"][None, :, None, None]).reshape(B, 3, num_heads, ch, HW)
    q, k, v = qkv[:, 0], qkv[:, 1], qkv[:, 2]
    qn = q / jnp.maximum(jnp.linalg.norm(q, axis=-1, keepdims=True), 1e-12)
    kn = k / jnp.maximum(jnp.linalg.norm(k, axis=-1, keepdims=True), 1e-12)
    attn = jnp.einsum("bhcn,bhdn->bhcd", qn, kn) * params["temperature"][None]
    attn = jax.nn.softmax(attn, axis=-1)
    out = jnp.einsum("bhcd,bhdn->bhcn", attn, v).reshape(B, C, HW)
    out = jnp.einsum("oc,bcn->bon", params["w_proj"], out) + params["b_proj"][None, :, None]
    return out.reshape(B, C, H, W)


if __name__ == "__main__":
    B, dim, H, W = 2, 16, 16, 16
    num_heads = 4

    key = jax.random.PRNGKey(0)
    kp, kx = jax.random.split(key)
    params = init_params(kp, dim, num_heads)
    x = jax.random.normal(kx, (B, dim, H, W), jnp.float32)

    out = jax.block_until_ready(attention_forward(params, x, num_heads))
    ref = jax.block_until_ready(reference_forward(params, x, num_heads))

    assert out.shape == (B, dim, H, W)
    # bf16 activations / MXU operands => looser tolerance than the f32 path.
    np.testing.assert_allclose(np.asarray(out), np.asarray(ref), rtol=2e-2, atol=2e-2)

    print("KERNEL_OK")
</pallas_src>

<mosaic_0001>
module attributes {stable_mosaic.version = 11 : i64} {
  func.func @_qkv_dw_kernel(%arg0: i32, %arg1: i32, %arg2: memref<1x16x256xf32, #tpu.memory_space<vmem>>, %arg3: memref<48x16xf32, #tpu.memory_space<vmem>>, %arg4: memref<48x1xf32, #tpu.memory_space<vmem>>, %arg5: memref<48x9xf32, #tpu.memory_space<vmem>>, %arg6: memref<48x1xf32, #tpu.memory_space<vmem>>, %arg7: memref<9x256xf32, #tpu.memory_space<vmem>>, %arg8: memref<1x48x256xbf16, #tpu.memory_space<vmem>>) attributes {dimension_semantics = [#tpu.dimension_semantics<parallel>, #tpu.dimension_semantics<parallel>], iteration_bounds = array<i64: 2, 1>, scalar_prefetch = 0 : i64, scratch_operands = 0 : i64, tpu.core_type = #tpu.core_type<tc>, window_params = [{transform_indices = @transform_0, window_bounds = array<i64: 1, 16, 256>}, {transform_indices = @transform_1, window_bounds = array<i64: 48, 16>}, {transform_indices = @transform_2, window_bounds = array<i64: 48, 1>}, {transform_indices = @transform_3, window_bounds = array<i64: 48, 9>}, {transform_indices = @transform_4, window_bounds = array<i64: 48, 1>}, {pipeline_mode = #tpu.pipeline_mode<synchronous>, transform_indices = @transform_5, window_bounds = array<i64: 9, 256>}, {transform_indices = @transform_6, window_bounds = array<i64: 1, 48, 256>}]} {
    %c0 = arith.constant 0 : index
    %c0_0 = arith.constant 0 : index
    %c0_1 = arith.constant 0 : index
    %0 = vector.load %arg2[%c0, %c0_0, %c0_1] : memref<1x16x256xf32, #tpu.memory_space<vmem>>, vector<1x16x256xf32>
    %1 = vector.shape_cast %0 : vector<1x16x256xf32> to vector<16x256xf32>
    %2 = arith.truncf %1 : vector<16x256xf32> to vector<16x256xbf16>
    %c0_2 = arith.constant 0 : index
    %c0_3 = arith.constant 0 : index
    %3 = vector.load %arg3[%c0_2, %c0_3] : memref<48x16xf32, #tpu.memory_space<vmem>>, vector<48x16xf32>
    %4 = arith.truncf %3 : vector<48x16xf32> to vector<48x16xbf16>
    %cst = arith.constant dense<0.000000e+00> : vector<48x256xf32>
    %5 = tpu.matmul %4, %2, %cst {dimension_numbers = #tpu.dot_dimension_numbers<[1], [0], [0], [1], [0, 0, 1, 1], [], []>} : vector<48x16xbf16>, vector<16x256xbf16>, vector<48x256xf32> -> vector<48x256xf32>
    %c0_4 = arith.constant 0 : index
    %c0_5 = arith.constant 0 : index
    %6 = vector.load %arg4[%c0_4, %c0_5] : memref<48x1xf32, #tpu.memory_space<vmem>>, vector<48x1xf32>
    %7 = vector.broadcast %6 : vector<48x1xf32> to vector<48x256xf32>
    %8 = arith.addf %5, %7 : vector<48x256xf32>
    %cst_6 = arith.constant 0.000000e+00 : f32
    %9 = vector.broadcast %cst_6 : f32 to vector<48x256xf32>
    %c17_i32 = arith.constant 17 : i32
    %10 = tpu.dynamic_rotate %8 by %c17_i32 dim 1 : vector<48x256xf32>, i32 -> vector<48x256xf32>
    %c0_7 = arith.constant 0 : index
    %c0_8 = arith.constant 0 : index
    %11 = vector.load %arg5[%c0_7, %c0_8] : memref<48x9xf32, #tpu.memory_space<vmem>>, vector<48x1xf32>
    %c0_9 = arith.constant 0 : index
    %c0_10 = arith.constant 0 : index
    %12 = vector.load %arg7[%c0_9, %c0_10] : memref<9x256xf32, #tpu.memory_space<vmem>>, vector<1x256xf32>
    %13 = vector.broadcast %12 : vector<1x256xf32> to vector<48x256xf32>
    %14 = arith.mulf %10, %13 : vector<48x256xf32>
    %15 = vector.broadcast %11 : vector<48x1xf32> to vector<48x256xf32>
    %16 = arith.mulf %14, %15 : vector<48x256xf32>
    %17 = arith.addf %9, %16 : vector<48x256xf32>
    %c16_i32 = arith.constant 16 : i32
    %18 = tpu.dynamic_rotate %8 by %c16_i32 dim 1 : vector<48x256xf32>, i32 -> vector<48x256xf32>
    %c0_11 = arith.constant 0 : index
    %c1 = arith.constant 1 : index
    %19 = vector.load %arg5[%c0_11, %c1] : memref<48x9xf32, #tpu.memory_space<vmem>>, vector<48x1xf32>
    %c1_12 = arith.constant 1 : index
    %c0_13 = arith.constant 0 : index
    %20 = vector.load %arg7[%c1_12, %c0_13] : memref<9x256xf32, #tpu.memory_space<vmem>>, vector<1x256xf32>
    %21 = vector.broadcast %20 : vector<1x256xf32> to vector<48x256xf32>
    %22 = arith.mulf %18, %21 : vector<48x256xf32>
    %23 = vector.broadcast %19 : vector<48x1xf32> to vector<48x256xf32>
    %24 = arith.mulf %22, %23 : vector<48x256xf32>
    %25 = arith.addf %17, %24 : vector<48x256xf32>
    %c15_i32 = arith.constant 15 : i32
    %26 = tpu.dynamic_rotate %8 by %c15_i32 dim 1 : vector<48x256xf32>, i32 -> vector<48x256xf32>
    %c0_14 = arith.constant 0 : index
    %c2 = arith.constant 2 : index
    %27 = vector.load %arg5[%c0_14, %c2] : memref<48x9xf32, #tpu.memory_space<vmem>>, vector<48x1xf32>
    %c2_15 = arith.constant 2 : index
    %c0_16 = arith.constant 0 : index
    %28 = vector.load %arg7[%c2_15, %c0_16] : memref<9x256xf32, #tpu.memory_space<vmem>>, vector<1x256xf32>
    %29 = vector.broadcast %28 : vector<1x256xf32> to vector<48x256xf32>
    %30 = arith.mulf %26, %29 : vector<48x256xf32>
    %31 = vector.broadcast %27 : vector<48x1xf32> to vector<48x256xf32>
    %32 = arith.mulf %30, %31 : vector<48x256xf32>
    %33 = arith.addf %25, %32 : vector<48x256xf32>
    %c1_i32 = arith.constant 1 : i32
    %34 = tpu.dynamic_rotate %8 by %c1_i32 dim 1 : vector<48x256xf32>, i32 -> vector<48x256xf32>
    %c0_17 = arith.constant 0 : index
    %c3 = arith.constant 3 : index
    %35 = vector.load %arg5[%c0_17, %c3] : memref<48x9xf32, #tpu.memory_space<vmem>>, vector<48x1xf32>
    %c3_18 = arith.constant 3 : index
    %c0_19 = arith.constant 0 : index
    %36 = vector.load %arg7[%c3_18, %c0_19] : memref<9x256xf32, #tpu.memory_space<vmem>>, vector<1x256xf32>
    %37 = vector.broadcast %36 : vector<1x256xf32> to vector<48x256xf32>
    %38 = arith.mulf %34, %37 : vector<48x256xf32>
    %39 = vector.broadcast %35 : vector<48x1xf32> to vector<48x256xf32>
    %40 = arith.mulf %38, %39 : vector<48x256xf32>
    %41 = arith.addf %33, %40 : vector<48x256xf32>
    %c0_20 = arith.constant 0 : index
    %c4 = arith.constant 4 : index
    %42 = vector.load %arg5[%c0_20, %c4] : memref<48x9xf32, #tpu.memory_space<vmem>>, vector<48x1xf32>
    %43 = vector.broadcast %42 : vector<48x1xf32> to vector<48x256xf32>
    %44 = arith.mulf %8, %43 : vector<48x256xf32>
    %45 = arith.addf %41, %44 : vector<48x256xf32>
    %c255_i32 = arith.constant 255 : i32
    %46 = tpu.dynamic_rotate %8 by %c255_i32 dim 1 : vector<48x256xf32>, i32 -> vector<48x256xf32>
    %c0_21 = arith.constant 0 : index
    %c5 = arith.constant 5 : index
    %47 = vector.load %arg5[%c0_21, %c5] : memref<48x9xf32, #tpu.memory_space<vmem>>, vector<48x1xf32>
    %c5_22 = arith.constant 5 : index
    %c0_23 = arith.constant 0 : index
    %48 = vector.load %arg7[%c5_22, %c0_23] : memref<9x256xf32, #tpu.memory_space<vmem>>, vector<1x256xf32>
    %49 = vector.broadcast %48 : vector<1x256xf32> to vector<48x256xf32>
    %50 = arith.mulf %46, %49 : vector<48x256xf32>
    %51 = vector.broadcast %47 : vector<48x1xf32> to vector<48x256xf32>
    %52 = arith.mulf %50, %51 : vector<48x256xf32>
    %53 = arith.addf %45, %52 : vector<48x256xf32>
    %c241_i32 = arith.constant 241 : i32
    %54 = tpu.dynamic_rotate %8 by %c241_i32 dim 1 : vector<48x256xf32>, i32 -> vector<48x256xf32>
    %c0_24 = arith.constant 0 : index
    %c6 = arith.constant 6 : index
    %55 = vector.load %arg5[%c0_24, %c6] : memref<48x9xf32, #tpu.memory_space<vmem>>, vector<48x1xf32>
    %c6_25 = arith.constant 6 : index
    %c0_26 = arith.constant 0 : index
    %56 = vector.load %arg7[%c6_25, %c0_26] : memref<9x256xf32, #tpu.memory_space<vmem>>, vector<1x256xf32>
    %57 = vector.broadcast %56 : vector<1x256xf32> to vector<48x256xf32>
    %58 = arith.mulf %54, %57 : vector<48x256xf32>
    %59 = vector.broadcast %55 : vector<48x1xf32> to vector<48x256xf32>
    %60 = arith.mulf %58, %59 : vector<48x256xf32>
    %61 = arith.addf %53, %60 : vector<48x256xf32>
    %c240_i32 = arith.constant 240 : i32
    %62 = tpu.dynamic_rotate %8 by %c240_i32 dim 1 : vector<48x256xf32>, i32 -> vector<48x256xf32>
    %c0_27 = arith.constant 0 : index
    %c7 = arith.constant 7 : index
    %63 = vector.load %arg5[%c0_27, %c7] : memref<48x9xf32, #tpu.memory_space<vmem>>, vector<48x1xf32>
    %c7_28 = arith.constant 7 : index
    %c0_29 = arith.constant 0 : index
    %64 = vector.load %arg7[%c7_28, %c0_29] : memref<9x256xf32, #tpu.memory_space<vmem>>, vector<1x256xf32>
    %65 = vector.broadcast %64 : vector<1x256xf32> to vector<48x256xf32>
    %66 = arith.mulf %62, %65 : vector<48x256xf32>
    %67 = vector.broadcast %63 : vector<48x1xf32> to vector<48x256xf32>
    %68 = arith.mulf %66, %67 : vector<48x256xf32>
    %69 = arith.addf %61, %68 : vector<48x256xf32>
    %c239_i32 = arith.constant 239 : i32
    %70 = tpu.dynamic_rotate %8 by %c239_i32 dim 1 : vector<48x256xf32>, i32 -> vector<48x256xf32>
    %c0_30 = arith.constant 0 : index
    %c8 = arith.constant 8 : index
    %71 = vector.load %arg5[%c0_30, %c8] : memref<48x9xf32, #tpu.memory_space<vmem>>, vector<48x1xf32>
    %c8_31 = arith.constant 8 : index
    %c0_32 = arith.constant 0 : index
    %72 = vector.load %arg7[%c8_31, %c0_32] : memref<9x256xf32, #tpu.memory_space<vmem>>, vector<1x256xf32>
    %73 = vector.broadcast %72 : vector<1x256xf32> to vector<48x256xf32>
    %74 = arith.mulf %70, %73 : vector<48x256xf32>
    %75 = vector.broadcast %71 : vector<48x1xf32> to vector<48x256xf32>
    %76 = arith.mulf %74, %75 : vector<48x256xf32>
    %77 = arith.addf %69, %76 : vector<48x256xf32>
    %c0_33 = arith.constant 0 : index
    %c0_34 = arith.constant 0 : index
    %78 = vector.load %arg6[%c0_33, %c0_34] : memref<48x1xf32, #tpu.memory_space<vmem>>, vector<48x1xf32>
    %79 = vector.broadcast %78 : vector<48x1xf32> to vector<48x256xf32>
    %80 = arith.addf %77, %79 : vector<48x256xf32>
    %81 = arith.truncf %80 : vector<48x256xf32> to vector<48x256xbf16>
    %c0_35 = arith.constant 0 : index
    %c0_36 = arith.constant 0 : index
    %c0_37 = arith.constant 0 : index
    %82 = vector.load %arg8[%c0_35, %c0_36, %c0_37] : memref<1x48x256xbf16, #tpu.memory_space<vmem>>, vector<1x48x256xbf16>
    %83 = vector.shape_cast %82 : vector<1x48x256xbf16> to vector<48x256xbf16>
    %84 = vector.shape_cast %81 : vector<48x256xbf16> to vector<1x48x256xbf16>
    tpu.vector_store %arg8[%c0_35, %c0_36, %c0_37], %84 {strides = array<i32>} : memref<1x48x256xbf16, #tpu.memory_space<vmem>>, vector<1x48x256xbf16>,
    return
  }
  func.func @transform_0(%arg0: i32, %arg1: i32) -> (i32, i32, i32) {
    %c0_i32 = arith.constant 0 : i32
    %c0_i32_0 = arith.constant 0 : i32
    %c0_i32_1 = arith.constant 0 : i32
    return %arg0, %c0_i32, %c0_i32_0 : i32, i32, i32
  }
  func.func @transform_1(%arg0: i32, %arg1: i32) -> (i32, i32) {
    %c0_i32 = arith.constant 0 : i32
    %c0_i32_0 = arith.constant 0 : i32
    return %arg1, %c0_i32 : i32, i32
  }
  func.func @transform_2(%arg0: i32, %arg1: i32) -> (i32, i32) {
    %c0_i32 = arith.constant 0 : i32
    %c0_i32_0 = arith.constant 0 : i32
    return %arg1, %c0_i32 : i32, i32
  }
  func.func @transform_3(%arg0: i32, %arg1: i32) -> (i32, i32) {
    %c0_i32 = arith.constant 0 : i32
    %c0_i32_0 = arith.constant 0 : i32
    return %arg1, %c0_i32 : i32, i32
  }
  func.func @transform_4(%arg0: i32, %arg1: i32) -> (i32, i32) {
    %c0_i32 = arith.constant 0 : i32
    %c0_i32_0 = arith.constant 0 : i32
    return %arg1, %c0_i32 : i32, i32
  }
  func.func @transform_5(%arg0: i32, %arg1: i32) -> (i32, i32) {
    %c0_i32 = arith.constant 0 : i32
    %c0_i32_0 = arith.constant 0 : i32
    %c0_i32_1 = arith.constant 0 : i32
    return %c0_i32, %c0_i32_0 : i32, i32
  }
  func.func @transform_6(%arg0: i32, %arg1: i32) -> (i32, i32, i32) {
    %c0_i32 = arith.constant 0 : i32
    %c0_i32_0 = arith.constant 0 : i32
    return %arg0, %arg1, %c0_i32 : i32, i32, i32
  }
}

</mosaic_0001>

<llo_original>
// kernel: tpu_custom_call.1
$region0: #{tpu_custom_call.1}
  #allocation0 [shape = 'u32[]', space=smem, size = 0x4, offset = 0x4, fixed_abs, tag = 'smem constant byte address 0x4 - core index']
  #allocation1 [shape = 'u32[144,128]{1,0:T(1,128)}', space=vmem, size = 0x12000, scoped, tag = 'internal scratch']
  %s0 = inlined_call_operand.hbm [shape: f32[2,16,256], index: 0, kind: input, shape index: {}]
  %s1 = inlined_call_operand.hbm [shape: f32[48,16], index: 1, kind: input, shape index: {}]
  %s2 = inlined_call_operand.hbm [shape: f32[48,1], index: 2, kind: input, shape index: {}]
  %s3 = inlined_call_operand.hbm [shape: f32[48,9], index: 3, kind: input, shape index: {}]
  %s4 = inlined_call_operand.hbm [shape: f32[48,1], index: 4, kind: input, shape index: {}]
  %s5 = inlined_call_operand.hbm [shape: f32[9,256], index: 5, kind: input, shape index: {}]
  %s6 = inlined_call_operand.hbm [shape: bf16[2,48,256], index: 6, kind: output, shape index: {}]
  %s7 = sld [smem:[#allocation0]]
  $region81: #{tpu_custom_call.1} parent=0
    _
  %s9 = ssub.s32 1, %s7
  %s10 = scalar_select 0, %s9, %s7
  $region1: #{tpu_custom_call.1} parent=0
    #allocation2 [shape = 'u8[32768]{0}', space=vmem, size = 0x8000, scoped, tag = 'input window, operand 0']
    #allocation3 [shape = 's32[2]{0}', space=sflag, size = 0x8, scoped, tag = 'scoped memory for tpu_custom_call.1']
    #allocation4 [shape = 's32[2]{0}', space=sflag, size = 0x8, scoped, tag = 'scoped memory for tpu_custom_call.1']
    #allocation5 [shape = 'u8[24576]{0}', space=vmem, size = 0x6000, scoped, tag = 'input window, operand 1, single buffered']
    #allocation6 [shape = 's32[1]{0}', space=sflag, size = 0x4, scoped, tag = 'scoped memory for tpu_custom_call.1']
    #allocation7 [shape = 'u8[24576]{0}', space=vmem, size = 0x6000, scoped, tag = 'input window, operand 2, single buffered']
    #allocation8 [shape = 'u8[24576]{0}', space=vmem, size = 0x6000, scoped, tag = 'input window, operand 3, single buffered']
    #allocation9 [shape = 's32[1]{0}', space=sflag, size = 0x4, scoped, tag = 'scoped memory for tpu_custom_call.1']
    #allocation10 [shape = 'u8[24576]{0}', space=vmem, size = 0x6000, scoped, tag = 'input window, operand 4, single buffered']
    #allocation11 [shape = 'u8[16384]{0}', space=vmem, size = 0x4000, scoped, tag = 'input window, operand 5, single buffered']
    #allocation12 [shape = 's32[1]{0}', space=sflag, size = 0x4, scoped, tag = 'scoped memory for tpu_custom_call.1']
    #allocation13 [shape = 'u8[49152]{0}', space=vmem, size = 0xc000, scoped, tag = 'output window, operand 0']
    %11 = vsyncpa [#allocation3], 0
    %s12 = scalar_lea.sflag [#allocation3], 1
    %13 = vsyncpa %s12, 0
    %14 = vsyncpa [#allocation6], 0
    %15 = vsyncpa [#allocation9], 0
    %16 = vsyncpa [#allocation12], 0
    %17 = vsyncpa [#allocation4], 0
    %s18 = scalar_lea.sflag [#allocation4], 1
    %19 = vsyncpa %s18, 0
    loop: start=0, step=1, limit=4
    $region2: #{tpu_custom_call.1} parent=1 // loop_pre_header
      _
    $region3: #{tpu_custom_call.1} parent=1 // loop_header
      %s21 = sphi 0, %s25
      %p22 = scmp.ge.s32.totalorder %s21, 4
      %s28 = sphi 0, %s40
      %s29 = sphi 0, %s36
      %s30 = sphi 0, %s28
      %s31 = sphi 0, %s29
      %s32 = sphi 0, %s30
      %s33 = sphi 0, %s31
      %s43 = sphi 0, %s45
      %s46 = sphi 0, %s43
      %s47 = sphi 0, %s46
      %s63 = sphi 0, %s47
      %s69 = sphi 0, %s71
      %s72 = sphi 0, %s69
      %s73 = sphi 0, %s72
      %s89 = sphi 0, %s73
      %s95 = sphi 0, %s97
      %s98 = sphi 0, %s95
      %s99 = sphi 0, %s98
      %s115 = sphi 0, %s99
      %s121 = sphi 0, %s123
      %s124 = sphi 0, %s121
      %s125 = sphi 0, %s124
      %s141 = sphi 0, %s125
      %s147 = sphi 0, %s149
      %s150 = sphi 0, %s147
      %s151 = sphi 0, %s150
      %s167 = sphi 0, %s151
      %s171 = sphi 0, %s171
      %s173 = sphi 0, %s171
      %s174 = sphi 0, %s173
      %s188 = sphi 0, %s174
      %s196 = sphi 0, %s198
      %s199 = sphi 0, %s196
      %s200 = sphi 0, %s199
      %s216 = sphi 0, %s200
    $region4: #{tpu_custom_call.1} parent=1 // loop_header_branch
      %24 = sbr.rel (%p22) target = $region8
    $region5: #{tpu_custom_call.1} parent=1 // loop_body
      %s26 = ssub.s32 %s21, 1
      %s27 = ssub.s32 %s21, 2
      %s34 = sadd.s32 1, %s29
      %p35 = scmp.ge.s32.totalorder %s34, 1
      %s36 = scalar_select %p35, 0, %s34
      %s37 = sadd.s32 1, %s28
      %s38 = scalar_select %p35, %s37, %s28
      %p39 = scmp.ge.s32.totalorder %s38, 2
      %s40 = scalar_select %p39, 0, %s38
      %s41 = ssub.s32 %s28, %s40
      %p42 = scmp.eq.s32.totalorder %s41, 0
      %s44 = sadd.s32 %s43, 1
      %s45 = scalar_select %p42, %s43, %s44
      %p48 = pneg %p42
      %p49 = scmp.eq.s32.totalorder %s21, 1
      %p50 = por %p48, %p49
      %p51 = scmp.ne.s32.totalorder %s43, %s46
      %p52 = scmp.eq.s32.totalorder %s21, 0
      %p53 = por %p51, %p52
      %p54 = scmp.ne.s32.totalorder %s43, %s46
      %p55 = scmp.eq.s32.totalorder %s26, 1
      %p56 = por %p54, %p55
      %p57 = scmp.ne.s32.totalorder %s46, %s47
      %p58 = scmp.eq.s32.totalorder %s26, 0
      %p59 = por %p57, %p58
      %p60 = scmp.ne.s32.totalorder %s46, %s47
      %p61 = scmp.eq.s32.totalorder %s27, 1
      %p62 = por %p60, %p61
      %p64 = scmp.ne.s32.totalorder %s47, %s63
      %p65 = scmp.eq.s32.totalorder %s27, 0
      %p66 = por %p64, %p65
      %s67 = ssub.s32 %s29, %s36
      %p68 = scmp.eq.s32.totalorder %s67, 0
      %s70 = sadd.s32 %s69, 1
      %s71 = scalar_select %p68, %s69, %s70
      %p74 = pneg %p68
      %p75 = scmp.eq.s32.totalorder %s21, 1
      %p76 = por %p74, %p75
      %p77 = scmp.ne.s32.totalorder %s69, %s72
      %p78 = scmp.eq.s32.totalorder %s21, 0
      %p79 = por %p77, %p78
      %p80 = scmp.ne.s32.totalorder %s69, %s72
      %p81 = scmp.eq.s32.totalorder %s26, 1
      %p82 = por %p80, %p81
      %p83 = scmp.ne.s32.totalorder %s72, %s73
      %p84 = scmp.eq.s32.totalorder %s26, 0
      %p85 = por %p83, %p84
      %p86 = scmp.ne.s32.totalorder %s72, %s73
      %p87 = scmp.eq.s32.totalorder %s27, 1
      %p88 = por %p86, %p87
      %p90 = scmp.ne.s32.totalorder %s73, %s89
      %p91 = scmp.eq.s32.totalorder %s27, 0
      %p92 = por %p90, %p91
      %s93 = ssub.s32 %s29, %s36
      %p94 = scmp.eq.s32.totalorder %s93, 0
      %s96 = sadd.s32 %s95, 1
      %s97 = scalar_select %p94, %s95, %s96
      %p100 = pneg %p94
      %p101 = scmp.eq.s32.totalorder %s21, 1
      %p102 = por %p100, %p101
      %p103 = scmp.ne.s32.totalorder %s95, %s98
      %p104 = scmp.eq.s32.totalorder %s21, 0
      %p105 = por %p103, %p104
      %p106 = scmp.ne.s32.totalorder %s95, %s98
      %p107 = scmp.eq.s32.totalorder %s26, 1
      %p108 = por %p106, %p107
      %p109 = scmp.ne.s32.totalorder %s98, %s99
      %p110 = scmp.eq.s32.totalorder %s26, 0
      %p111 = por %p109, %p110
      %p112 = scmp.ne.s32.totalorder %s98, %s99
      %p113 = scmp.eq.s32.totalorder %s27, 1
      %p114 = por %p112, %p113
      %p116 = scmp.ne.s32.totalorder %s99, %s115
      %p117 = scmp.eq.s32.totalorder %s27, 0
      %p118 = por %p116, %p117
      %s119 = ssub.s32 %s29, %s36
      %p120 = scmp.eq.s32.totalorder %s119, 0
      %s122 = sadd.s32 %s121, 1
      %s123 = scalar_select %p120, %s121, %s122
      %p126 = pneg %p120
      %p127 = scmp.eq.s32.totalorder %s21, 1
      %p128 = por %p126, %p127
      %p129 = scmp.ne.s32.totalorder %s121, %s124
      %p130 = scmp.eq.s32.totalorder %s21, 0
      %p131 = por %p129, %p130
      %p132 = scmp.ne.s32.totalorder %s121, %s124
      %p133 = scmp.eq.s32.totalorder %s26, 1
      %p134 = por %p132, %p133
      %p135 = scmp.ne.s32.totalorder %s124, %s125
      %p136 = scmp.eq.s32.totalorder %s26, 0
      %p137 = por %p135, %p136
      %p138 = scmp.ne.s32.totalorder %s124, %s125
      %p139 = scmp.eq.s32.totalorder %s27, 1
      %p140 = por %p138, %p139
      %p142 = scmp.ne.s32.totalorder %s125, %s141
      %p143 = scmp.eq.s32.totalorder %s27, 0
      %p144 = por %p142, %p143
      %s145 = ssub.s32 %s29, %s36
      %p146 = scmp.eq.s32.totalorder %s145, 0
      %s148 = sadd.s32 %s147, 1
      %s149 = scalar_select %p146, %s147, %s148
      %p152 = pneg %p146
      %p153 = scmp.eq.s32.totalorder %s21, 1
      %p154 = por %p152, %p153
      %p155 = scmp.ne.s32.totalorder %s147, %s150
      %p156 = scmp.eq.s32.totalorder %s21, 0
      %p157 = por %p155, %p156
      %p158 = scmp.ne.s32.totalorder %s147, %s150
      %p159 = scmp.eq.s32.totalorder %s26, 1
      %p160 = por %p158, %p159
      %p161 = scmp.ne.s32.totalorder %s150, %s151
      %p162 = scmp.eq.s32.totalorder %s26, 0
      %p163 = por %p161, %p162
      %p164 = scmp.ne.s32.totalorder %s150, %s151
      %p165 = scmp.eq.s32.totalorder %s27, 1
      %p166 = por %p164, %p165
      %p168 = scmp.ne.s32.totalorder %s151, %s167
      %p169 = scmp.eq.s32.totalorder %s27, 0
      %p170 = por %p168, %p169
      %s172 = sadd.s32 %s171, 1
      %p175 = scmp.eq.s32.totalorder %s21, 1
      %p176 = scmp.ne.s32.totalorder %s171, %s173
      %p177 = scmp.eq.s32.totalorder %s21, 0
      %p178 = por %p176, %p177
      %p179 = scmp.ne.s32.totalorder %s171, %s173
      %p180 = scmp.eq.s32.totalorder %s26, 1
      %p181 = por %p179, %p180
      %p182 = scmp.ne.s32.totalorder %s173, %s174
      %p183 = scmp.eq.s32.totalorder %s26, 0
      %p184 = por %p182, %p183
      %p185 = scmp.ne.s32.totalorder %s173, %s174
      %p186 = scmp.eq.s32.totalorder %s27, 1
      %p187 = por %p185, %p186
      %p189 = scmp.ne.s32.totalorder %s174, %s188
      %p190 = scmp.eq.s32.totalorder %s27, 0
      %p191 = por %p189, %p190
      %s192 = ssub.s32 %s28, %s40
      %s193 = ssub.s32 %s29, %s36
      %s194 = sor.u32 %s192, %s193
      %p195 = scmp.eq.s32.totalorder %s194, 0
      %s197 = sadd.s32 %s196, 1
      %s198 = scalar_select %p195, %s196, %s197
      %p201 = pneg %p195
      %p202 = scmp.eq.s32.totalorder %s21, 1
      %p203 = por %p201, %p202
      %p204 = scmp.ne.s32.totalorder %s196, %s199
      %p205 = scmp.eq.s32.totalorder %s21, 0
      %p206 = por %p204, %p205
      %p207 = scmp.ne.s32.totalorder %s196, %s199
      %p208 = scmp.eq.s32.totalorder %s26, 1
      %p209 = por %p207, %p208
      %p210 = scmp.ne.s32.totalorder %s199, %s200
      %p211 = scmp.eq.s32.totalorder %s26, 0
      %p212 = por %p210, %p211
      %p213 = scmp.ne.s32.totalorder %s199, %s200
      %p214 = scmp.eq.s32.totalorder %s27, 1
      %p215 = por %p213, %p214
      %p217 = scmp.ne.s32.totalorder %s200, %s216
      %p218 = scmp.eq.s32.totalorder %s27, 0
      %p219 = por %p217, %p218
      %p220 = scmp.le.s32.totalorder 1, %s21
      %p221 = scmp.lt.s32.totalorder %s21, 3
      %p222 = pnand %p220, %p221
      %p223 = pneg %p222
      // Predicated region
      $region9: #{tpu_custom_call.1} parent=5 // pred_check
        _
      $region10: #{tpu_custom_call.1} parent=5 // pred_check_branch
        %225 = sbr.rel (%p222) target = $region12
      $region11: #{tpu_custom_call.1} parent=5 // pred_region
        %s226 = ssub.s32 %s21, 1
        // Predicated region
        $region13: #{tpu_custom_call.1} parent=11 // pred_check
          %p227 = pneg %p85
        $region14: #{tpu_custom_call.1} parent=11 // pred_check_branch
          %229 = sbr.rel (%p227) target = $region16
        $region15: #{tpu_custom_call.1} parent=11 // pred_region
          %s230 = smul.u32 6, %s31
          %s232 = ssub.s32 768, 768
          %233 = vsyncadd [#allocation6], %s232
          %s234 = smul.addr %s230, 128
          %s235 = scalar_lea.hbm %s1, %s234
          %s236 = sshll.u32 [#allocation5], 4
          %s237 = int_to_ptr.vmem [resolvable:$true] %s236
          %242 = dma.hbm_to_vmem [thread:$0]  %s235, 768, %s237, [#allocation6], 128, 128, 8
        $region16: #{tpu_custom_call.1} parent=11 // pred_fallthru
          _
        // Predicated region
        $region17: #{tpu_custom_call.1} parent=11 // pred_check
          %p243 = pneg %p111
        $region18: #{tpu_custom_call.1} parent=11 // pred_check_branch
          %245 = sbr.rel (%p243) target = $region20
        $region19: #{tpu_custom_call.1} parent=11 // pred_region
          %s246 = smul.u32 6, %s31
          %s248 = ssub.s32 768, 768
          %249 = vsyncadd [#allocation6], %s248
          %s250 = smul.addr %s246, 128
          %s251 = scalar_lea.hbm %s2, %s250
          %s252 = sshll.u32 [#allocation7], 4
          %s253 = int_to_ptr.vmem [resolvable:$true] %s252
          %258 = dma.hbm_to_vmem [thread:$0]  %s251, 768, %s253, [#allocation6], 128, 128, 8
        $region20: #{tpu_custom_call.1} parent=11 // pred_fallthru
          _
        // Predicated region
        $region21: #{tpu_custom_call.1} parent=11 // pred_check
          %p259 = pneg %p137
        $region22: #{tpu_custom_call.1} parent=11 // pred_check_branch
          %261 = sbr.rel (%p259) target = $region24
        $region23: #{tpu_custom_call.1} parent=11 // pred_region
          %s262 = smul.u32 6, %s31
          %s264 = ssub.s32 768, 768
          %265 = vsyncadd [#allocation9], %s264
          %s266 = smul.addr %s262, 128
          %s267 = scalar_lea.hbm %s3, %s266
          %s268 = sshll.u32 [#allocation8], 4
          %s269 = int_to_ptr.vmem [resolvable:$true] %s268
          %274 = dma.hbm_to_vmem [thread:$0]  %s267, 768, %s269, [#allocation9], 128, 128, 8
        $region24: #{tpu_custom_call.1} parent=11 // pred_fallthru
          _
        // Predicated region
        $region25: #{tpu_custom_call.1} parent=11 // pred_check
          %p275 = pneg %p163
        $region26: #{tpu_custom_call.1} parent=11 // pred_check_branch
          %277 = sbr.rel (%p275) target = $region28
        $region27: #{tpu_custom_call.1} parent=11 // pred_region
          %s278 = smul.u32 6, %s31
          %s280 = ssub.s32 768, 768
          %281 = vsyncadd [#allocation9], %s280
          %s282 = smul.addr %s278, 128
          %s283 = scalar_lea.hbm %s4, %s282
          %s284 = sshll.u32 [#allocation10], 4
          %s285 = int_to_ptr.vmem [resolvable:$true] %s284
          %290 = dma.hbm_to_vmem [thread:$0]  %s283, 768, %s285, [#allocation9], 128, 128, 8
        $region28: #{tpu_custom_call.1} parent=11 // pred_fallthru
          _
        // Predicated region
        $region29: #{tpu_custom_call.1} parent=11 // pred_check
          %p291 = pneg %p184
        $region30: #{tpu_custom_call.1} parent=11 // pred_check_branch
          %293 = sbr.rel (%p291) target = $region32
        $region31: #{tpu_custom_call.1} parent=11 // pred_region
          %s295 = ssub.s32 512, 512
          %296 = vsyncadd [#allocation12], %s295
          %s297 = sshll.u32 [#allocation11], 4
          %s298 = int_to_ptr.vmem [resolvable:$true] %s297
          %303 = dma.hbm_to_vmem [thread:$0]  %s5, 512, %s298, [#allocation12], 256, 256, 16
        $region32: #{tpu_custom_call.1} parent=11 // pred_fallthru
          _
      $region12: #{tpu_custom_call.1} parent=5 // pred_fallthru
        _
      %p304 = scmp.lt.s32.totalorder %s21, 2
      // Predicated region
      $region33: #{tpu_custom_call.1} parent=5 // pred_check
        %p305 = pneg %p304
      $region34: #{tpu_custom_call.1} parent=5 // pred_check_branch
        %307 = sbr.rel (%p305) target = $region36
      $region35: #{tpu_custom_call.1} parent=5 // pred_region
        // Predicated region
        $region37: #{tpu_custom_call.1} parent=35 // pred_check
          %p308 = pneg %p53
        $region38: #{tpu_custom_call.1} parent=35 // pred_check_branch
          %310 = sbr.rel (%p308) target = $region40
        $region39: #{tpu_custom_call.1} parent=35 // pred_region
          %s311 = sand.u32 %s43, 1
          %s312 = scalar_lea.sflag [#allocation3], %s311
          %s313 = sand.u32 %s43, 1
          %s314 = smul.addr %s313, 32
          %s315 = scalar_lea.vmem [#allocation2], %s314
          %s317 = ssub.s32 512, 512
          %318 = vsyncadd %s312, %s317
          %s319 = smul.addr %s28, 4
          %s320 = smul.addr %s319, 128
          %s321 = scalar_lea.hbm %s0, %s320
          %s322 = sshll.u32 %s315, 4
          %s323 = int_to_ptr.vmem [resolvable:$true] %s322
          %328 = dma.hbm_to_vmem [thread:$0]  %s321, 512, %s323, %s312, 256, 256, 16
        $region40: #{tpu_custom_call.1} parent=35 // pred_fallthru
          _
      $region36: #{tpu_custom_call.1} parent=5 // pred_fallthru
        _
      %p329 = scmp.le.s32.totalorder 1, %s21
      %p330 = scmp.lt.s32.totalorder %s21, 3
      %p331 = pnand %p329, %p330
      %p332 = pneg %p331
      // Predicated region
      $region41: #{tpu_custom_call.1} parent=5 // pred_check
        _
      $region42: #{tpu_custom_call.1} parent=5 // pred_check_branch
        %334 = sbr.rel (%p331) target = $region44
      $region43: #{tpu_custom_call.1} parent=5 // pred_region
        %s335 = ssub.s32 %s21, 1
        %s336 = sand.u32 %s46, 1
        %s337 = scalar_lea.sflag [#allocation3], %s336
        %s338 = sand.u32 %s46, 1
        %s339 = smul.addr %s338, 32
        %s340 = scalar_lea.vmem [#allocation2], %s339
        // Predicated region
        $region45: #{tpu_custom_call.1} parent=43 // pred_check
          %p341 = pneg %p59
        $region46: #{tpu_custom_call.1} parent=43 // pred_check_branch
          %343 = sbr.rel (%p341) target = $region48
        $region47: #{tpu_custom_call.1} parent=43 // pred_region
          %344 = dma.done %s337, 512
        $region48: #{tpu_custom_call.1} parent=43 // pred_fallthru
          _
        // Predicated region
        $region49: #{tpu_custom_call.1} parent=43 // pred_check
          %p345 = pneg %p85
        $region50: #{tpu_custom_call.1} parent=43 // pred_check_branch
          %347 = sbr.rel (%p345) target = $region52
        $region51: #{tpu_custom_call.1} parent=43 // pred_region
          %348 = dma.done [#allocation6], 768
        $region52: #{tpu_custom_call.1} parent=43 // pred_fallthru
          _
        // Predicated region
        $region53: #{tpu_custom_call.1} parent=43 // pred_check
          %p349 = pneg %p111
        $region54: #{tpu_custom_call.1} parent=43 // pred_check_branch
          %351 = sbr.rel (%p349) target = $region56
        $region55: #{tpu_custom_call.1} parent=43 // pred_region
          %352 = dma.done [#allocation6], 768
        $region56: #{tpu_custom_call.1} parent=43 // pred_fallthru
          _
        // Predicated region
        $region57: #{tpu_custom_call.1} parent=43 // pred_check
          %p353 = pneg %p137
        $region58: #{tpu_custom_call.1} parent=43 // pred_check_branch
          %355 = sbr.rel (%p353) target = $region60
        $region59: #{tpu_custom_call.1} parent=43 // pred_region
          %356 = dma.done [#allocation9], 768
        $region60: #{tpu_custom_call.1} parent=43 // pred_fallthru
          _
        // Predicated region
        $region61: #{tpu_custom_call.1} parent=43 // pred_check
          %p357 = pneg %p163
        $region62: #{tpu_custom_call.1} parent=43 // pred_check_branch
          %359 = sbr.rel (%p357) target = $region64
        $region63: #{tpu_custom_call.1} parent=43 // pred_region
          %360 = dma.done [#allocation9], 768
        $region64: #{tpu_custom_call.1} parent=43 // pred_fallthru
          _
        // Predicated region
        $region65: #{tpu_custom_call.1} parent=43 // pred_check
          %p361 = pneg %p184
        $region66: #{tpu_custom_call.1} parent=43 // pred_check_branch
          %363 = sbr.rel (%p361) target = $region68
        $region67: #{tpu_custom_call.1} parent=43 // pred_region
          %364 = dma.done [#allocation12], 512
        $region68: #{tpu_custom_call.1} parent=43 // pred_fallthru
          _
        %s365 = sand.u32 %s46, 1
        %s366 = scalar_lea.sflag [#allocation3], %s365
        %s367 = sand.u32 %s46, 1
        %s368 = smul.addr %s367, 32
        %s369 = scalar_lea.vmem [#allocation2], %s368
        %p370 = pneg %p59
        %p371 = pneg %p56
        %p372 = pneg %p85
        %p373 = pneg %p82
        %p374 = pneg %p111
        %p375 = pneg %p108
        %p376 = pneg %p137
        %p377 = pneg %p134
        %p378 = pneg %p163
        %p379 = pneg %p160
        %p380 = pneg %p184
        %p381 = pneg %p181
        %p382 = pneg %p212
        %p383 = pneg %p209
        %s384 = sand.u32 %s199, 1
        %s385 = scalar_lea.sflag [#allocation4], %s384
        %s386 = sand.u32 %s199, 1
        %s387 = smul.addr %s386, 48
        %s388 = scalar_lea.vmem [#allocation13], %s387
        %s389 = smul.u32 6, %s31
        %s390 = smul.u32 6, %s31
        %s391 = smul.u32 6, %s31
        %s392 = smul.u32 6, %s31
        %s393 = smul.u32 6, %s31
        %v395 = vld [vmem:[%s340] sm:$0xff]
        %v396 = vld [vmem:[%s340 + $0x8] sm:$0xff]
        %v397 = vld [vmem:[%s340 + $0x10] sm:$0xff]
        %v398 = vld [vmem:[%s340 + $0x18] sm:$0xff]
        %v399 = vpack.c.bf16 %v397, %v395
        %v400 = vpack.c.bf16 %v398, %v396
        %v401 = vld [vmem:[#allocation5] sm:$0xff]
        %v402 = vld [vmem:[#allocation5 + $0x8] sm:$0xff]
        %v403 = vld [vmem:[#allocation5 + $0x10] sm:$0xff]
        %v404 = vld [vmem:[#allocation5 + $0x18] sm:$0xff]
        %v405 = vld [vmem:[#allocation5 + $0x20] sm:$0xff]
        %v406 = vld [vmem:[#allocation5 + $0x28] sm:$0xff]
        %v407 = vpack.c.bf16 %v402, %v401
        %v408 = vpack.c.bf16 %v404, %v403
        %v409 = vpack.c.bf16 %v406, %v405
        %v410 = vld [vmem:[#allocation7] sm:$0xff]
        %v411 = vld [vmem:[#allocation7 + $0x8] sm:$0xff]
        %v412 = vld [vmem:[#allocation7 + $0x10] sm:$0xff]
        %v413 = vld [vmem:[#allocation7 + $0x18] sm:$0xff]
        %v414 = vld [vmem:[#allocation7 + $0x20] sm:$0xff]
        %v415 = vld [vmem:[#allocation7 + $0x28] sm:$0xff]
        %417 = vset.pattern.permute.xlu0 0
        %418 = vperm.xlu0 %417, %v410
        %v419 = vpop.permute.xlu0 %418
        %422 = vset.pattern.permute.xlu0 0
        %423 = vperm.xlu0 %422, %v411
        %v424 = vpop.permute.xlu0 %423
        %427 = vset.pattern.permute.xlu0 0
        %428 = vperm.xlu0 %427, %v412
        %v429 = vpop.permute.xlu0 %428
        %432 = vset.pattern.permute.xlu0 0
        %433 = vperm.xlu0 %432, %v413
        %v434 = vpop.permute.xlu0 %433
        %437 = vset.pattern.permute.xlu0 0
        %438 = vperm.xlu0 %437, %v414
        %v439 = vpop.permute.xlu0 %438
        %442 = vset.pattern.permute.xlu0 0
        %443 = vperm.xlu0 %442, %v415
        %v444 = vpop.permute.xlu0 %443
        %vm446 = vcmask 130048
        %v448 = vsel %vm446, %v407, 0
        %v451 = vsel %vm446, %v408, 0
        %v454 = vsel %vm446, %v409, 0
        %456 = vmatprep.subr.bf16.mxu0 %v400
        %457 = vmatpush1.bf16.msra.mxu0 %v399
        %458 = vmatprep.subr.bf16.mxu0 0
        %459 = vmatpush1.bf16.msra.mxu0 0
        %460 = vmatprep.subr.bf16.mxu0 0
        %461 = vmatpush1.bf16.msra.mxu0 0
        %462 = vmatprep.subr.bf16.mxu0 0
        %463 = vmatpush1.bf16.msra.mxu0 0
        %464 = vmatprep.subr.bf16.mxu0 0
        %465 = vmatpush1.bf16.msra.mxu0 0
        %466 = vmatprep.subr.bf16.mxu0 0
        %467 = vmatpush1.bf16.msra.mxu0 0
        %468 = vmatprep.subr.bf16.mxu0 0
        %469 = vmatpush1.bf16.msra.mxu0 0
        %470 = vmatprep.subr.bf16.mxu0 0
        %471 = vmatpush1.bf16.msra.mxu0 0
        %472 = vmatprep.subr.bf16.mxu0 0
        %473 = vmatpush1.bf16.msra.mxu0 0
        %474 = vmatprep.subr.bf16.mxu0 0
        %475 = vmatpush1.bf16.msra.mxu0 0
        %476 = vmatprep.subr.bf16.mxu0 0
        %477 = vmatpush1.bf16.msra.mxu0 0
        %478 = vmatprep.subr.bf16.mxu0 0
        %479 = vmatpush1.bf16.msra.mxu0 0
        %480 = vmatprep.subr.bf16.mxu0 0
        %481 = vmatpush1.bf16.msra.mxu0 0
        %482 = vmatprep.subr.bf16.mxu0 0
        %483 = vmatpush1.bf16.msra.mxu0 0
        %484 = vmatprep.subr.bf16.mxu0 0
        %485 = vmatpush1.bf16.msra.mxu0 0
        %486 = vmatprep.subr.bf16.mxu0 0
        %487 = vmatpush1.bf16.msra.mxu0 0
        %488 = vmatprep.mubr.bf16.mxu0 0
        %489 = vmatmul.mubr.bf16.gmra.mrb[0].mxu0 %v448
        %v490 = vpop.f32.mrb[0].mxu0
        %v491 = vadd.f32 %v419, %v490
        %v492 = vpop.f32.mrb[0].mxu0
        %v493 = vadd.f32 %v419, %v492
        %v494 = vpop.f32.mrb[0].mxu0
        %v495 = vadd.f32 %v424, %v494
        %v496 = vpop.f32.mrb[0].mxu0
        %v497 = vadd.f32 %v424, %v496
        %498 = vmatprep.mubr.bf16.mxu0 0
        %499 = vmatmul.mubr.bf16.gmra.mrb[0].mxu0 %v451
        %v500 = vpop.f32.mrb[0].mxu0
        %v501 = vadd.f32 %v429, %v500
        %v502 = vpop.f32.mrb[0].mxu0
        %v503 = vadd.f32 %v429, %v502
        %v504 = vpop.f32.mrb[0].mxu0
        %v505 = vadd.f32 %v434, %v504
        %v506 = vpop.f32.mrb[0].mxu0
        %v507 = vadd.f32 %v434, %v506
        %508 = vmatprep.mubr.bf16.mxu0 0
        %509 = vmatmul.mubr.bf16.gmra.mrb[0].mxu0 %v454
        %v510 = vpop.f32.mrb[0].mxu0
        %v511 = vadd.f32 %v439, %v510
        %v512 = vpop.f32.mrb[0].mxu0
        %v513 = vadd.f32 %v439, %v512
        %v514 = vpop.f32.mrb[0].mxu0
        %v515 = vadd.f32 %v444, %v514
        %v516 = vpop.f32.mrb[0].mxu0
        %v517 = vadd.f32 %v444, %v516
        %518 = vdwg.mxu0
        %519 = vrot.lane.b32.xlu0 %v491, 17
        %v520 = vpop.permute.xlu0 %519
        %521 = vrot.lane.b32.xlu0 %v495, 17
        %v522 = vpop.permute.xlu0 %521
        %523 = vrot.lane.b32.xlu0 %v501, 17
        %v524 = vpop.permute.xlu0 %523
        %525 = vrot.lane.b32.xlu0 %v505, 17
        %v526 = vpop.permute.xlu0 %525
        %527 = vrot.lane.b32.xlu0 %v511, 17
        %v528 = vpop.permute.xlu0 %527
        %529 = vrot.lane.b32.xlu0 %v515, 17
        %v530 = vpop.permute.xlu0 %529
        %531 = vrot.lane.b32.xlu0 %v493, 17
        %v532 = vpop.permute.xlu0 %531
        %533 = vrot.lane.b32.xlu0 %v497, 17
        %v534 = vpop.permute.xlu0 %533
        %535 = vrot.lane.b32.xlu0 %v503, 17
        %v536 = vpop.permute.xlu0 %535
        %537 = vrot.lane.b32.xlu0 %v507, 17
        %v538 = vpop.permute.xlu0 %537
        %539 = vrot.lane.b32.xlu0 %v513, 17
        %v540 = vpop.permute.xlu0 %539
        %541 = vrot.lane.b32.xlu0 %v517, 17
        %v542 = vpop.permute.xlu0 %541
        %v543 = vlaneseq
        %v544 = vand.u32 %v543, 127
        %vm545 = vcmp.lt.s32.totalorder %v544, 17
        %v546 = vsel %vm545, %v520, %v532
        %v547 = vsel %vm545, %v522, %v534
        %v548 = vsel %vm545, %v524, %v536
        %v549 = vsel %vm545, %v526, %v538
        %v550 = vsel %vm545, %v528, %v540
        %v551 = vsel %vm545, %v530, %v542
        %v552 = vsel %vm545, %v532, %v520
        %v553 = vsel %vm545, %v534, %v522
        %v554 = vsel %vm545, %v536, %v524
        %v555 = vsel %vm545, %v538, %v526
        %v556 = vsel %vm545, %v540, %v528
        %v557 = vsel %vm545, %v542, %v530
        %v558 = vld [vmem:[#allocation8] sm:$0xff]
        %v559 = vld [vmem:[#allocation8 + $0x8] sm:$0xff]
        %v560 = vld [vmem:[#allocation8 + $0x10] sm:$0xff]
        %v561 = vld [vmem:[#allocation8 + $0x18] sm:$0xff]
        %v562 = vld [vmem:[#allocation8 + $0x20] sm:$0xff]
        %v563 = vld [vmem:[#allocation8 + $0x28] sm:$0xff]
        %v564 = vld [vmem:[#allocation11] ss:$8 sm:$0x3]
        %v566 = vlaneseq
        %v567 = vshrl.u32 %v566, 7
        %v568 = vsub.s32 0, %v567
        %v569 = vrot.slane %v564, %v568
        %v570 = vlaneseq
        %v571 = vshrl.u32 %v570, 7
        %v572 = vsub.s32 1, %v571
        %v573 = vrot.slane %v564, %v572
        %v576 = vmul.f32 %v552, %v569
        %v577 = vmul.f32 %v546, %v573
        %v578 = vmul.f32 %v553, %v569
        %v579 = vmul.f32 %v547, %v573
        %v580 = vmul.f32 %v554, %v569
        %v581 = vmul.f32 %v548, %v573
        %v582 = vmul.f32 %v555, %v569
        %v583 = vmul.f32 %v549, %v573
        %v584 = vmul.f32 %v556, %v569
        %v585 = vmul.f32 %v550, %v573
        %v586 = vmul.f32 %v557, %v569
        %v587 = vmul.f32 %v551, %v573
        %589 = vset.pattern.permute.xlu0 0
        %590 = vperm.xlu0 %589, %v558
        %v591 = vpop.permute.xlu0 %590
        %594 = vset.pattern.permute.xlu0 0
        %595 = vperm.xlu0 %594, %v559
        %v596 = vpop.permute.xlu0 %595
        %599 = vset.pattern.permute.xlu0 0
        %600 = vperm.xlu0 %599, %v560
        %v601 = vpop.permute.xlu0 %600
        %604 = vset.pattern.permute.xlu0 0
        %605 = vperm.xlu0 %604, %v561
        %v606 = vpop.permute.xlu0 %605
        %609 = vset.pattern.permute.xlu0 0
        %610 = vperm.xlu0 %609, %v562
        %v611 = vpop.permute.xlu0 %610
        %614 = vset.pattern.permute.xlu0 0
        %615 = vperm.xlu0 %614, %v563
        %v616 = vpop.permute.xlu0 %615
        %v618 = vmul.f32 %v576, %v591
        %v619 = vmul.f32 %v577, %v591
        %v620 = vmul.f32 %v578, %v596
        %v621 = vmul.f32 %v579, %v596
        %v622 = vmul.f32 %v580, %v601
        %v623 = vmul.f32 %v581, %v601
        %v624 = vmul.f32 %v582, %v606
        %v625 = vmul.f32 %v583, %v606
        %v626 = vmul.f32 %v584, %v611
        %v627 = vmul.f32 %v585, %v611
        %v628 = vmul.f32 %v586, %v616
        %v629 = vmul.f32 %v587, %v616
        %v630 = vadd.f32 %v618, 0.0
        %v631 = vadd.f32 %v619, 0.0
        %v632 = vadd.f32 %v620, 0.0
        %v633 = vadd.f32 %v621, 0.0
        %v634 = vadd.f32 %v622, 0.0
        %v635 = vadd.f32 %v623, 0.0
        %v636 = vadd.f32 %v624, 0.0
        %v637 = vadd.f32 %v625, 0.0
        %v638 = vadd.f32 %v626, 0.0
        %v639 = vadd.f32 %v627, 0.0
        %v640 = vadd.f32 %v628, 0.0
        %v641 = vadd.f32 %v629, 0.0
        %642 = vrot.lane.b32.xlu0 %v491, 16
        %v643 = vpop.permute.xlu0 %642
        %644 = vrot.lane.b32.xlu0 %v495, 16
        %v645 = vpop.permute.xlu0 %644
        %646 = vrot.lane.b32.xlu0 %v501, 16
        %v647 = vpop.permute.xlu0 %646
        %648 = vrot.lane.b32.xlu0 %v505, 16
        %v649 = vpop.permute.xlu0 %648
        %650 = vrot.lane.b32.xlu0 %v511, 16
        %v651 = vpop.permute.xlu0 %650
        %652 = vrot.lane.b32.xlu0 %v515, 16
        %v653 = vpop.permute.xlu0 %652
        %654 = vrot.lane.b32.xlu0 %v493, 16
        %v655 = vpop.permute.xlu0 %654
        %656 = vrot.lane.b32.xlu0 %v497, 16
        %v657 = vpop.permute.xlu0 %656
        %658 = vrot.lane.b32.xlu0 %v503, 16
        %v659 = vpop.permute.xlu0 %658
        %660 = vrot.lane.b32.xlu0 %v507, 16
        %v661 = vpop.permute.xlu0 %660
        %662 = vrot.lane.b32.xlu0 %v513, 16
        %v663 = vpop.permute.xlu0 %662
        %664 = vrot.lane.b32.xlu0 %v517, 16
        %v665 = vpop.permute.xlu0 %664
        %vm666 = vcmp.lt.s32.totalorder %v544, 16
        %v667 = vsel %vm666, %v643, %v655
        %v668 = vsel %vm666, %v645, %v657
        %v669 = vsel %vm666, %v647, %v659
        %v670 = vsel %vm666, %v649, %v661
        %v671 = vsel %vm666, %v651, %v663
        %v672 = vsel %vm666, %v653, %v665
        %v673 = vsel %vm666, %v655, %v643
        %v674 = vsel %vm666, %v657, %v645
        %v675 = vsel %vm666, %v659, %v647
        %v676 = vsel %vm666, %v661, %v649
        %v677 = vsel %vm666, %v663, %v651
        %v678 = vsel %vm666, %v665, %v653
        %s679 = scalar_lea.vmem [#allocation11], 1
        %v680 = vld [vmem:[%s679] ss:$8 sm:$0x3]
        %v682 = vlaneseq
        %v683 = vshrl.u32 %v682, 7
        %v684 = vsub.s32 0, %v683
        %v685 = vrot.slane %v680, %v684
        %v686 = vlaneseq
        %v687 = vshrl.u32 %v686, 7
        %v688 = vsub.s32 1, %v687
        %v689 = vrot.slane %v680, %v688
        %v692 = vmul.f32 %v673, %v685
        %v693 = vmul.f32 %v667, %v689
        %v694 = vmul.f32 %v674, %v685
        %v695 = vmul.f32 %v668, %v689
        %v696 = vmul.f32 %v675, %v685
        %v697 = vmul.f32 %v669, %v689
        %v698 = vmul.f32 %v676, %v685
        %v699 = vmul.f32 %v670, %v689
        %v700 = vmul.f32 %v677, %v685
        %v701 = vmul.f32 %v671, %v689
        %v702 = vmul.f32 %v678, %v685
        %v703 = vmul.f32 %v672, %v689
        %704 = vset.pattern.permute.xlu0 1
        %705 = vperm.xlu0 %704, %v558
        %v706 = vpop.permute.xlu0 %705
        %708 = vset.pattern.permute.xlu0 1
        %709 = vperm.xlu0 %708, %v559
        %v710 = vpop.permute.xlu0 %709
        %712 = vset.pattern.permute.xlu0 1
        %713 = vperm.xlu0 %712, %v560
        %v714 = vpop.permute.xlu0 %713
        %716 = vset.pattern.permute.xlu0 1
        %717 = vperm.xlu0 %716, %v561
        %v718 = vpop.permute.xlu0 %717
        %720 = vset.pattern.permute.xlu0 1
        %721 = vperm.xlu0 %720, %v562
        %v722 = vpop.permute.xlu0 %721
        %724 = vset.pattern.permute.xlu0 1
        %725 = vperm.xlu0 %724, %v563
        %v726 = vpop.permute.xlu0 %725
        %v728 = vmul.f32 %v692, %v706
        %v729 = vmul.f32 %v693, %v706
        %v730 = vmul.f32 %v694, %v710
        %v731 = vmul.f32 %v695, %v710
        %v732 = vmul.f32 %v696, %v714
        %v733 = vmul.f32 %v697, %v714
        %v734 = vmul.f32 %v698, %v718
        %v735 = vmul.f32 %v699, %v718
        %v736 = vmul.f32 %v700, %v722
        %v737 = vmul.f32 %v701, %v722
        %v738 = vmul.f32 %v702, %v726
        %v739 = vmul.f32 %v703, %v726
        %v740 = vadd.f32 %v630, %v728
        %v741 = vadd.f32 %v631, %v729
        %v742 = vadd.f32 %v632, %v730
        %v743 = vadd.f32 %v633, %v731
        %v744 = vadd.f32 %v634, %v732
        %v745 = vadd.f32 %v635, %v733
        %v746 = vadd.f32 %v636, %v734
        %v747 = vadd.f32 %v637, %v735
        %v748 = vadd.f32 %v638, %v736
        %v749 = vadd.f32 %v639, %v737
        %v750 = vadd.f32 %v640, %v738
        %v751 = vadd.f32 %v641, %v739
        %752 = vrot.lane.b32.xlu0 %v491, 15
        %v753 = vpop.permute.xlu0 %752
        %754 = vrot.lane.b32.xlu0 %v495, 15
        %v755 = vpop.permute.xlu0 %754
        %756 = vrot.lane.b32.xlu0 %v501, 15
        %v757 = vpop.permute.xlu0 %756
        %758 = vrot.lane.b32.xlu0 %v505, 15
        %v759 = vpop.permute.xlu0 %758
        %760 = vrot.lane.b32.xlu0 %v511, 15
        %v761 = vpop.permute.xlu0 %760
        %762 = vrot.lane.b32.xlu0 %v515, 15
        %v763 = vpop.permute.xlu0 %762
        %764 = vrot.lane.b32.xlu0 %v493, 15
        %v765 = vpop.permute.xlu0 %764
        %766 = vrot.lane.b32.xlu0 %v497, 15
        %v767 = vpop.permute.xlu0 %766
        %768 = vrot.lane.b32.xlu0 %v503, 15
        %v769 = vpop.permute.xlu0 %768
        %770 = vrot.lane.b32.xlu0 %v507, 15
        %v771 = vpop.permute.xlu0 %770
        %772 = vrot.lane.b32.xlu0 %v513, 15
        %v773 = vpop.permute.xlu0 %772
        %774 = vrot.lane.b32.xlu0 %v517, 15
        %v775 = vpop.permute.xlu0 %774
        %vm776 = vcmp.lt.s32.totalorder %v544, 15
        %v777 = vsel %vm776, %v753, %v765
        %v778 = vsel %vm776, %v755, %v767
        %v779 = vsel %vm776, %v757, %v769
        %v780 = vsel %vm776, %v759, %v771
        %v781 = vsel %vm776, %v761, %v773
        %v782 = vsel %vm776, %v763, %v775
        %v783 = vsel %vm776, %v765, %v753
        %v784 = vsel %vm776, %v767, %v755
        %v785 = vsel %vm776, %v769, %v757
        %v786 = vsel %vm776, %v771, %v759
        %v787 = vsel %vm776, %v773, %v761
        %v788 = vsel %vm776, %v775, %v763
        %s789 = scalar_lea.vmem [#allocation11], 2
        %v790 = vld [vmem:[%s789] ss:$8 sm:$0x3]
        %v792 = vlaneseq
        %v793 = vshrl.u32 %v792, 7
        %v794 = vsub.s32 0, %v793
        %v795 = vrot.slane %v790, %v794
        %v796 = vlaneseq
        %v797 = vshrl.u32 %v796, 7
        %v798 = vsub.s32 1, %v797
        %v799 = vrot.slane %v790, %v798
        %v802 = vmul.f32 %v783, %v795
        %v803 = vmul.f32 %v777, %v799
        %v804 = vmul.f32 %v784, %v795
        %v805 = vmul.f32 %v778, %v799
        %v806 = vmul.f32 %v785, %v795
        %v807 = vmul.f32 %v779, %v799
        %v808 = vmul.f32 %v786, %v795
        %v809 = vmul.f32 %v780, %v799
        %v810 = vmul.f32 %v787, %v795
        %v811 = vmul.f32 %v781, %v799
        %v812 = vmul.f32 %v788, %v795
        %v813 = vmul.f32 %v782, %v799
        %814 = vset.pattern.permute.xlu0 2
        %815 = vperm.xlu0 %814, %v558
        %v816 = vpop.permute.xlu0 %815
        %818 = vset.pattern.permute.xlu0 2
        %819 = vperm.xlu0 %818, %v559
        %v820 = vpop.permute.xlu0 %819
        %822 = vset.pattern.permute.xlu0 2
        %823 = vperm.xlu0 %822, %v560
        %v824 = vpop.permute.xlu0 %823
        %826 = vset.pattern.permute.xlu0 2
        %827 = vperm.xlu0 %826, %v561
        %v828 = vpop.permute.xlu0 %827
        %830 = vset.pattern.permute.xlu0 2
        %831 = vperm.xlu0 %830, %v562
        %v832 = vpop.permute.xlu0 %831
        %834 = vset.pattern.permute.xlu0 2
        %835 = vperm.xlu0 %834, %v563
        %v836 = vpop.permute.xlu0 %835
        %v838 = vmul.f32 %v802, %v816
        %v839 = vmul.f32 %v803, %v816
        %v840 = vmul.f32 %v804, %v820
        %v841 = vmul.f32 %v805, %v820
        %v842 = vmul.f32 %v806, %v824
        %v843 = vmul.f32 %v807, %v824
        %v844 = vmul.f32 %v808, %v828
        %v845 = vmul.f32 %v809, %v828
        %v846 = vmul.f32 %v810, %v832
        %v847 = vmul.f32 %v811, %v832
        %v848 = vmul.f32 %v812, %v836
        %v849 = vmul.f32 %v813, %v836
        %v850 = vadd.f32 %v740, %v838
        %v851 = vadd.f32 %v741, %v839
        %v852 = vadd.f32 %v742, %v840
        %v853 = vadd.f32 %v743, %v841
        %v854 = vadd.f32 %v744, %v842
        %v855 = vadd.f32 %v745, %v843
        %v856 = vadd.f32 %v746, %v844
        %v857 = vadd.f32 %v747, %v845
        %v858 = vadd.f32 %v748, %v846
        %v859 = vadd.f32 %v749, %v847
        %v860 = vadd.f32 %v750, %v848
        %v861 = vadd.f32 %v751, %v849
        %862 = vrot.lane.b32.xlu0 %v491, 1
        %v863 = vpop.permute.xlu0 %862
        %864 = vrot.lane.b32.xlu0 %v495, 1
        %v865 = vpop.permute.xlu0 %864
        %866 = vrot.lane.b32.xlu0 %v501, 1
        %v867 = vpop.permute.xlu0 %866
        %868 = vrot.lane.b32.xlu0 %v505, 1
        %v869 = vpop.permute.xlu0 %868
        %870 = vrot.lane.b32.xlu0 %v511, 1
        %v871 = vpop.permute.xlu0 %870
        %872 = vrot.lane.b32.xlu0 %v515, 1
        %v873 = vpop.permute.xlu0 %872
        %874 = vrot.lane.b32.xlu0 %v493, 1
        %v875 = vpop.permute.xlu0 %874
        %876 = vrot.lane.b32.xlu0 %v497, 1
        %v877 = vpop.permute.xlu0 %876
        %878 = vrot.lane.b32.xlu0 %v503, 1
        %v879 = vpop.permute.xlu0 %878
        %880 = vrot.lane.b32.xlu0 %v507, 1
        %v881 = vpop.permute.xlu0 %880
        %882 = vrot.lane.b32.xlu0 %v513, 1
        %v883 = vpop.permute.xlu0 %882
        %884 = vrot.lane.b32.xlu0 %v517, 1
        %v885 = vpop.permute.xlu0 %884
        %vm886 = vcmp.lt.s32.totalorder %v544, 1
        %v887 = vsel %vm886, %v863, %v875
        %v888 = vsel %vm886, %v865, %v877
        %v889 = vsel %vm886, %v867, %v879
        %v890 = vsel %vm886, %v869, %v881
        %v891 = vsel %vm886, %v871, %v883
        %v892 = vsel %vm886, %v873, %v885
        %v893 = vsel %vm886, %v875, %v863
        %v894 = vsel %vm886, %v877, %v865
        %v895 = vsel %vm886, %v879, %v867
        %v896 = vsel %vm886, %v881, %v869
        %v897 = vsel %vm886, %v883, %v871
        %v898 = vsel %vm886, %v885, %v873
        %s899 = scalar_lea.vmem [#allocation11], 3
        %v900 = vld [vmem:[%s899] ss:$8 sm:$0x3]
        %v902 = vlaneseq
        %v903 = vshrl.u32 %v902, 7
        %v904 = vsub.s32 0, %v903
        %v905 = vrot.slane %v900, %v904
        %v906 = vlaneseq
        %v907 = vshrl.u32 %v906, 7
        %v908 = vsub.s32 1, %v907
        %v909 = vrot.slane %v900, %v908
        %v912 = vmul.f32 %v893, %v905
        %v913 = vmul.f32 %v887, %v909
        %v914 = vmul.f32 %v894, %v905
        %v915 = vmul.f32 %v888, %v909
        %v916 = vmul.f32 %v895, %v905
        %v917 = vmul.f32 %v889, %v909
        %v918 = vmul.f32 %v896, %v905
        %v919 = vmul.f32 %v890, %v909
        %v920 = vmul.f32 %v897, %v905
        %v921 = vmul.f32 %v891, %v909
        %v922 = vmul.f32 %v898, %v905
        %v923 = vmul.f32 %v892, %v909
        %924 = vset.pattern.permute.xlu0 3
        %925 = vperm.xlu0 %924, %v558
        %v926 = vpop.permute.xlu0 %925
        %928 = vset.pattern.permute.xlu0 3
        %929 = vperm.xlu0 %928, %v559
        %v930 = vpop.permute.xlu0 %929
        %932 = vset.pattern.permute.xlu0 3
        %933 = vperm.xlu0 %932, %v560
        %v934 = vpop.permute.xlu0 %933
        %936 = vset.pattern.permute.xlu0 3
        %937 = vperm.xlu0 %936, %v561
        %v938 = vpop.permute.xlu0 %937
        %940 = vset.pattern.permute.xlu0 3
        %941 = vperm.xlu0 %940, %v562
        %v942 = vpop.permute.xlu0 %941
        %944 = vset.pattern.permute.xlu0 3
        %945 = vperm.xlu0 %944, %v563
        %v946 = vpop.permute.xlu0 %945
        %v948 = vmul.f32 %v912, %v926
        %v949 = vmul.f32 %v913, %v926
        %v950 = vmul.f32 %v914, %v930
        %v951 = vmul.f32 %v915, %v930
        %v952 = vmul.f32 %v916, %v934
        %v953 = vmul.f32 %v917, %v934
        %v954 = vmul.f32 %v918, %v938
        %v955 = vmul.f32 %v919, %v938
        %v956 = vmul.f32 %v920, %v942
        %v957 = vmul.f32 %v921, %v942
        %v958 = vmul.f32 %v922, %v946
        %v959 = vmul.f32 %v923, %v946
        %v960 = vadd.f32 %v850, %v948
        %v961 = vadd.f32 %v851, %v949
        %v962 = vadd.f32 %v852, %v950
        %v963 = vadd.f32 %v853, %v951
        %v964 = vadd.f32 %v854, %v952
        %v965 = vadd.f32 %v855, %v953
        %v966 = vadd.f32 %v856, %v954
        %v967 = vadd.f32 %v857, %v955
        %v968 = vadd.f32 %v858, %v956
        %v969 = vadd.f32 %v859, %v957
        %v970 = vadd.f32 %v860, %v958
        %v971 = vadd.f32 %v861, %v959
        %972 = vset.pattern.permute.xlu0 4
        %973 = vperm.xlu0 %972, %v558
        %v974 = vpop.permute.xlu0 %973
        %976 = vset.pattern.permute.xlu0 4
        %977 = vperm.xlu0 %976, %v559
        %v978 = vpop.permute.xlu0 %977
        %980 = vset.pattern.permute.xlu0 4
        %981 = vperm.xlu0 %980, %v560
        %v982 = vpop.permute.xlu0 %981
        %984 = vset.pattern.permute.xlu0 4
        %985 = vperm.xlu0 %984, %v561
        %v986 = vpop.permute.xlu0 %985
        %988 = vset.pattern.permute.xlu0 4
        %989 = vperm.xlu0 %988, %v562
        %v990 = vpop.permute.xlu0 %989
        %992 = vset.pattern.permute.xlu0 4
        %993 = vperm.xlu0 %992, %v563
        %v994 = vpop.permute.xlu0 %993
        %v996 = vmul.f32 %v491, %v974
        %v997 = vmul.f32 %v493, %v974
        %v998 = vmul.f32 %v495, %v978
        %v999 = vmul.f32 %v497, %v978
        %v1000 = vmul.f32 %v501, %v982
        %v1001 = vmul.f32 %v503, %v982
        %v1002 = vmul.f32 %v505, %v986
        %v1003 = vmul.f32 %v507, %v986
        %v1004 = vmul.f32 %v511, %v990
        %v1005 = vmul.f32 %v513, %v990
        %v1006 = vmul.f32 %v515, %v994
        %v1007 = vmul.f32 %v517, %v994
        %v1008 = vadd.f32 %v960, %v996
        %v1009 = vadd.f32 %v961, %v997
        %v1010 = vadd.f32 %v962, %v998
        %v1011 = vadd.f32 %v963, %v999
        %v1012 = vadd.f32 %v964, %v1000
        %v1013 = vadd.f32 %v965, %v1001
        %v1014 = vadd.f32 %v966, %v1002
        %v1015 = vadd.f32 %v967, %v1003
        %v1016 = vadd.f32 %v968, %v1004
        %v1017 = vadd.f32 %v969, %v1005
        %v1018 = vadd.f32 %v970, %v1006
        %v1019 = vadd.f32 %v971, %v1007
        %1020 = vrot.lane.b32.xlu0 %v491, 127
        %v1021 = vpop.permute.xlu0 %1020
        %1022 = vrot.lane.b32.xlu0 %v495, 127
        %v1023 = vpop.permute.xlu0 %1022
        %1024 = vrot.lane.b32.xlu0 %v501, 127
        %v1025 = vpop.permute.xlu0 %1024
        %1026 = vrot.lane.b32.xlu0 %v505, 127
        %v1027 = vpop.permute.xlu0 %1026
        %1028 = vrot.lane.b32.xlu0 %v511, 127
        %v1029 = vpop.permute.xlu0 %1028
        %1030 = vrot.lane.b32.xlu0 %v515, 127
        %v1031 = vpop.permute.xlu0 %1030
        %1032 = vrot.lane.b32.xlu0 %v493, 127
        %v1033 = vpop.permute.xlu0 %1032
        %1034 = vrot.lane.b32.xlu0 %v497, 127
        %v1035 = vpop.permute.xlu0 %1034
        %1036 = vrot.lane.b32.xlu0 %v503, 127
        %v1037 = vpop.permute.xlu0 %1036
        %1038 = vrot.lane.b32.xlu0 %v507, 127
        %v1039 = vpop.permute.xlu0 %1038
        %1040 = vrot.lane.b32.xlu0 %v513, 127
        %v1041 = vpop.permute.xlu0 %1040
        %1042 = vrot.lane.b32.xlu0 %v517, 127
        %v1043 = vpop.permute.xlu0 %1042
        %vm1044 = vcmp.lt.s32.totalorder %v544, 127
        %v1045 = vsel %vm1044, %v1021, %v1033
        %v1046 = vsel %vm1044, %v1023, %v1035
        %v1047 = vsel %vm1044, %v1025, %v1037
        %v1048 = vsel %vm1044, %v1027, %v1039
        %v1049 = vsel %vm1044, %v1029, %v1041
        %v1050 = vsel %vm1044, %v1031, %v1043
        %v1051 = vsel %vm1044, %v1033, %v1021
        %v1052 = vsel %vm1044, %v1035, %v1023
        %v1053 = vsel %vm1044, %v1037, %v1025
        %v1054 = vsel %vm1044, %v1039, %v1027
        %v1055 = vsel %vm1044, %v1041, %v1029
        %v1056 = vsel %vm1044, %v1043, %v1031
        %s1057 = scalar_lea.vmem [#allocation11], 5
        %v1058 = vld [vmem:[%s1057] ss:$8 sm:$0x3]
        %v1060 = vlaneseq
        %v1061 = vshrl.u32 %v1060, 7
        %v1062 = vsub.s32 0, %v1061
        %v1063 = vrot.slane %v1058, %v1062
        %v1064 = vlaneseq
        %v1065 = vshrl.u32 %v1064, 7
        %v1066 = vsub.s32 1, %v1065
        %v1067 = vrot.slane %v1058, %v1066
        %v1070 = vmul.f32 %v1045, %v1063
        %v1071 = vmul.f32 %v1051, %v1067
        %v1072 = vmul.f32 %v1046, %v1063
        %v1073 = vmul.f32 %v1052, %v1067
        %v1074 = vmul.f32 %v1047, %v1063
        %v1075 = vmul.f32 %v1053, %v1067
        %v1076 = vmul.f32 %v1048, %v1063
        %v1077 = vmul.f32 %v1054, %v1067
        %v1078 = vmul.f32 %v1049, %v1063
        %v1079 = vmul.f32 %v1055, %v1067
        %v1080 = vmul.f32 %v1050, %v1063
        %v1081 = vmul.f32 %v1056, %v1067
        %1082 = vset.pattern.permute.xlu0 5
        %1083 = vperm.xlu0 %1082, %v558
        %v1084 = vpop.permute.xlu0 %1083
        %1086 = vset.pattern.permute.xlu0 5
        %1087 = vperm.xlu0 %1086, %v559
        %v1088 = vpop.permute.xlu0 %1087
        %1090 = vset.pattern.permute.xlu0 5
        %1091 = vperm.xlu0 %1090, %v560
        %v1092 = vpop.permute.xlu0 %1091
        %1094 = vset.pattern.permute.xlu0 5
        %1095 = vperm.xlu0 %1094, %v561
        %v1096 = vpop.permute.xlu0 %1095
        %1098 = vset.pattern.permute.xlu0 5
        %1099 = vperm.xlu0 %1098, %v562
        %v1100 = vpop.permute.xlu0 %1099
        %1102 = vset.pattern.permute.xlu0 5
        %1103 = vperm.xlu0 %1102, %v563
        %v1104 = vpop.permute.xlu0 %1103
        %v1106 = vmul.f32 %v1070, %v1084
        %v1107 = vmul.f32 %v1071, %v1084
        %v1108 = vmul.f32 %v1072, %v1088
        %v1109 = vmul.f32 %v1073, %v1088
        %v1110 = vmul.f32 %v1074, %v1092
        %v1111 = vmul.f32 %v1075, %v1092
        %v1112 = vmul.f32 %v1076, %v1096
        %v1113 = vmul.f32 %v1077, %v1096
        %v1114 = vmul.f32 %v1078, %v1100
        %v1115 = vmul.f32 %v1079, %v1100
        %v1116 = vmul.f32 %v1080, %v1104
        %v1117 = vmul.f32 %v1081, %v1104
        %v1118 = vadd.f32 %v1008, %v1106
        %v1119 = vadd.f32 %v1009, %v1107
        %v1120 = vadd.f32 %v1010, %v1108
        %v1121 = vadd.f32 %v1011, %v1109
        %v1122 = vadd.f32 %v1012, %v1110
        %v1123 = vadd.f32 %v1013, %v1111
        %v1124 = vadd.f32 %v1014, %v1112
        %v1125 = vadd.f32 %v1015, %v1113
        %v1126 = vadd.f32 %v1016, %v1114
        %v1127 = vadd.f32 %v1017, %v1115
        %v1128 = vadd.f32 %v1018, %v1116
        %v1129 = vadd.f32 %v1019, %v1117
        %1130 = vrot.lane.b32.xlu0 %v491, 113
        %v1131 = vpop.permute.xlu0 %1130
        %1132 = vrot.lane.b32.xlu0 %v495, 113
        %v1133 = vpop.permute.xlu0 %1132
        %1134 = vrot.lane.b32.xlu0 %v501, 113
        %v1135 = vpop.permute.xlu0 %1134
        %1136 = vrot.lane.b32.xlu0 %v505, 113
        %v1137 = vpop.permute.xlu0 %1136
        %1138 = vrot.lane.b32.xlu0 %v511, 113
        %v1139 = vpop.permute.xlu0 %1138
        %1140 = vrot.lane.b32.xlu0 %v515, 113
        %v1141 = vpop.permute.xlu0 %1140
        %1142 = vrot.lane.b32.xlu0 %v493, 113
        %v1143 = vpop.permute.xlu0 %1142
        %1144 = vrot.lane.b32.xlu0 %v497, 113
        %v1145 = vpop.permute.xlu0 %1144
        %1146 = vrot.lane.b32.xlu0 %v503, 113
        %v1147 = vpop.permute.xlu0 %1146
        %1148 = vrot.lane.b32.xlu0 %v507, 113
        %v1149 = vpop.permute.xlu0 %1148
        %1150 = vrot.lane.b32.xlu0 %v513, 113
        %v1151 = vpop.permute.xlu0 %1150
        %1152 = vrot.lane.b32.xlu0 %v517, 113
        %v1153 = vpop.permute.xlu0 %1152
        %vm1154 = vcmp.lt.s32.totalorder %v544, 113
        %v1155 = vsel %vm1154, %v1131, %v1143
        %v1156 = vsel %vm1154, %v1133, %v1145
        %v1157 = vsel %vm1154, %v1135, %v1147
        %v1158 = vsel %vm1154, %v1137, %v1149
        %v1159 = vsel %vm1154, %v1139, %v1151
        %v1160 = vsel %vm1154, %v1141, %v1153
        %v1161 = vsel %vm1154, %v1143, %v1131
        %v1162 = vsel %vm1154, %v1145, %v1133
        %v1163 = vsel %vm1154, %v1147, %v1135
        %v1164 = vsel %vm1154, %v1149, %v1137
        %v1165 = vsel %vm1154, %v1151, %v1139
        %v1166 = vsel %vm1154, %v1153, %v1141
        %s1167 = scalar_lea.vmem [#allocation11], 6
        %v1168 = vld [vmem:[%s1167] ss:$8 sm:$0x3]
        %v1170 = vlaneseq
        %v1171 = vshrl.u32 %v1170, 7
        %v1172 = vsub.s32 0, %v1171
        %v1173 = vrot.slane %v1168, %v1172
        %v1174 = vlaneseq
        %v1175 = vshrl.u32 %v1174, 7
        %v1176 = vsub.s32 1, %v1175
        %v1177 = vrot.slane %v1168, %v1176
        %v1180 = vmul.f32 %v1155, %v1173
        %v1181 = vmul.f32 %v1161, %v1177
        %v1182 = vmul.f32 %v1156, %v1173
        %v1183 = vmul.f32 %v1162, %v1177
        %v1184 = vmul.f32 %v1157, %v1173
        %v1185 = vmul.f32 %v1163, %v1177
        %v1186 = vmul.f32 %v1158, %v1173
        %v1187 = vmul.f32 %v1164, %v1177
        %v1188 = vmul.f32 %v1159, %v1173
        %v1189 = vmul.f32 %v1165, %v1177
        %v1190 = vmul.f32 %v1160, %v1173
        %v1191 = vmul.f32 %v1166, %v1177
        %1192 = vset.pattern.permute.xlu0 6
        %1193 = vperm.xlu0 %1192, %v558
        %v1194 = vpop.permute.xlu0 %1193
        %1196 = vset.pattern.permute.xlu0 6
        %1197 = vperm.xlu0 %1196, %v559
        %v1198 = vpop.permute.xlu0 %1197
        %1200 = vset.pattern.permute.xlu0 6
        %1201 = vperm.xlu0 %1200, %v560
        %v1202 = vpop.permute.xlu0 %1201
        %1204 = vset.pattern.permute.xlu0 6
        %1205 = vperm.xlu0 %1204, %v561
        %v1206 = vpop.permute.xlu0 %1205
        %1208 = vset.pattern.permute.xlu0 6
        %1209 = vperm.xlu0 %1208, %v562
        %v1210 = vpop.permute.xlu0 %1209
        %1212 = vset.pattern.permute.xlu0 6
        %1213 = vperm.xlu0 %1212, %v563
        %v1214 = vpop.permute.xlu0 %1213
        %v1216 = vmul.f32 %v1180, %v1194
        %v1217 = vmul.f32 %v1181, %v1194
        %v1218 = vmul.f32 %v1182, %v1198
        %v1219 = vmul.f32 %v1183, %v1198
        %v1220 = vmul.f32 %v1184, %v1202
        %v1221 = vmul.f32 %v1185, %v1202
        %v1222 = vmul.f32 %v1186, %v1206
        %v1223 = vmul.f32 %v1187, %v1206
        %v1224 = vmul.f32 %v1188, %v1210
        %v1225 = vmul.f32 %v1189, %v1210
        %v1226 = vmul.f32 %v1190, %v1214
        %v1227 = vmul.f32 %v1191, %v1214
        %v1228 = vadd.f32 %v1118, %v1216
        %v1229 = vadd.f32 %v1119, %v1217
        %v1230 = vadd.f32 %v1120, %v1218
        %v1231 = vadd.f32 %v1121, %v1219
        %v1232 = vadd.f32 %v1122, %v1220
        %v1233 = vadd.f32 %v1123, %v1221
        %v1234 = vadd.f32 %v1124, %v1222
        %v1235 = vadd.f32 %v1125, %v1223
        %v1236 = vadd.f32 %v1126, %v1224
        %v1237 = vadd.f32 %v1127, %v1225
        %v1238 = vadd.f32 %v1128, %v1226
        %v1239 = vadd.f32 %v1129, %v1227
        %1240 = vrot.lane.b32.xlu0 %v491, 112
        %v1241 = vpop.permute.xlu0 %1240
        %1242 = vrot.lane.b32.xlu0 %v495, 112
        %v1243 = vpop.permute.xlu0 %1242
        %1244 = vrot.lane.b32.xlu0 %v501, 112
        %v1245 = vpop.permute.xlu0 %1244
        %1246 = vrot.lane.b32.xlu0 %v505, 112
        %v1247 = vpop.permute.xlu0 %1246
        %1248 = vrot.lane.b32.xlu0 %v511, 112
        %v1249 = vpop.permute.xlu0 %1248
        %1250 = vrot.lane.b32.xlu0 %v515, 112
        %v1251 = vpop.permute.xlu0 %1250
        %1252 = vrot.lane.b32.xlu0 %v493, 112
        %v1253 = vpop.permute.xlu0 %1252
        %1254 = vrot.lane.b32.xlu0 %v497, 112
        %v1255 = vpop.permute.xlu0 %1254
        %1256 = vrot.lane.b32.xlu0 %v503, 112
        %v1257 = vpop.permute.xlu0 %1256
        %1258 = vrot.lane.b32.xlu0 %v507, 112
        %v1259 = vpop.permute.xlu0 %1258
        %1260 = vrot.lane.b32.xlu0 %v513, 112
        %v1261 = vpop.permute.xlu0 %1260
        %1262 = vrot.lane.b32.xlu0 %v517, 112
        %v1263 = vpop.permute.xlu0 %1262
        %vm1264 = vcmp.lt.s32.totalorder %v544, 112
        %v1265 = vsel %vm1264, %v1241, %v1253
        %v1266 = vsel %vm1264, %v1243, %v1255
        %v1267 = vsel %vm1264, %v1245, %v1257
        %v1268 = vsel %vm1264, %v1247, %v1259
        %v1269 = vsel %vm1264, %v1249, %v1261
        %v1270 = vsel %vm1264, %v1251, %v1263
        %v1271 = vsel %vm1264, %v1253, %v1241
        %v1272 = vsel %vm1264, %v1255, %v1243
        %v1273 = vsel %vm1264, %v1257, %v1245
        %v1274 = vsel %vm1264, %v1259, %v1247
        %v1275 = vsel %vm1264, %v1261, %v1249
        %v1276 = vsel %vm1264, %v1263, %v1251
        %s1277 = scalar_lea.vmem [#allocation11], 7
        %v1278 = vld [vmem:[%s1277] ss:$8 sm:$0x3]
        %v1280 = vlaneseq
        %v1281 = vshrl.u32 %v1280, 7
        %v1282 = vsub.s32 0, %v1281
        %v1283 = vrot.slane %v1278, %v1282
        %v1284 = vlaneseq
        %v1285 = vshrl.u32 %v1284, 7
        %v1286 = vsub.s32 1, %v1285
        %v1287 = vrot.slane %v1278, %v1286
        %v1290 = vmul.f32 %v1265, %v1283
        %v1291 = vmul.f32 %v1271, %v1287
        %v1292 = vmul.f32 %v1266, %v1283
        %v1293 = vmul.f32 %v1272, %v1287
        %v1294 = vmul.f32 %v1267, %v1283
        %v1295 = vmul.f32 %v1273, %v1287
        %v1296 = vmul.f32 %v1268, %v1283
        %v1297 = vmul.f32 %v1274, %v1287
        %v1298 = vmul.f32 %v1269, %v1283
        %v1299 = vmul.f32 %v1275, %v1287
        %v1300 = vmul.f32 %v1270, %v1283
        %v1301 = vmul.f32 %v1276, %v1287
        %1302 = vset.pattern.permute.xlu0 7
        %1303 = vperm.xlu0 %1302, %v558
        %v1304 = vpop.permute.xlu0 %1303
        %1306 = vset.pattern.permute.xlu0 7
        %1307 = vperm.xlu0 %1306, %v559
        %v1308 = vpop.permute.xlu0 %1307
        %1310 = vset.pattern.permute.xlu0 7
        %1311 = vperm.xlu0 %1310, %v560
        %v1312 = vpop.permute.xlu0 %1311
        %1314 = vset.pattern.permute.xlu0 7
        %1315 = vperm.xlu0 %1314, %v561
        %v1316 = vpop.permute.xlu0 %1315
        %1318 = vset.pattern.permute.xlu0 7
        %1319 = vperm.xlu0 %1318, %v562
        %v1320 = vpop.permute.xlu0 %1319
        %1322 = vset.pattern.permute.xlu0 7
        %1323 = vperm.xlu0 %1322, %v563
        %v1324 = vpop.permute.xlu0 %1323
        %v1326 = vmul.f32 %v1290, %v1304
        %v1327 = vmul.f32 %v1291, %v1304
        %v1328 = vmul.f32 %v1292, %v1308
        %v1329 = vmul.f32 %v1293, %v1308
        %v1330 = vmul.f32 %v1294, %v1312
        %v1331 = vmul.f32 %v1295, %v1312
        %v1332 = vmul.f32 %v1296, %v1316
        %v1333 = vmul.f32 %v1297, %v1316
        %v1334 = vmul.f32 %v1298, %v1320
        %v1335 = vmul.f32 %v1299, %v1320
        %v1336 = vmul.f32 %v1300, %v1324
        %v1337 = vmul.f32 %v1301, %v1324
        %v1338 = vadd.f32 %v1228, %v1326
        %v1339 = vadd.f32 %v1229, %v1327
        %v1340 = vadd.f32 %v1230, %v1328
        %v1341 = vadd.f32 %v1231, %v1329
        %v1342 = vadd.f32 %v1232, %v1330
        %v1343 = vadd.f32 %v1233, %v1331
        %v1344 = vadd.f32 %v1234, %v1332
        %v1345 = vadd.f32 %v1235, %v1333
        %v1346 = vadd.f32 %v1236, %v1334
        %v1347 = vadd.f32 %v1237, %v1335
        %v1348 = vadd.f32 %v1238, %v1336
        %v1349 = vadd.f32 %v1239, %v1337
        %1350 = vrot.lane.b32.xlu0 %v491, 111
        %v1351 = vpop.permute.xlu0 %1350
        %1352 = vrot.lane.b32.xlu0 %v495, 111
        %v1353 = vpop.permute.xlu0 %1352
        %1354 = vrot.lane.b32.xlu0 %v501, 111
        %v1355 = vpop.permute.xlu0 %1354
        %1356 = vrot.lane.b32.xlu0 %v505, 111
        %v1357 = vpop.permute.xlu0 %1356
        %1358 = vrot.lane.b32.xlu0 %v511, 111
        %v1359 = vpop.permute.xlu0 %1358
        %1360 = vrot.lane.b32.xlu0 %v515, 111
        %v1361 = vpop.permute.xlu0 %1360
        %1362 = vrot.lane.b32.xlu0 %v493, 111
        %v1363 = vpop.permute.xlu0 %1362
        %1364 = vrot.lane.b32.xlu0 %v497, 111
        %v1365 = vpop.permute.xlu0 %1364
        %1366 = vrot.lane.b32.xlu0 %v503, 111
        %v1367 = vpop.permute.xlu0 %1366
        %1368 = vrot.lane.b32.xlu0 %v507, 111
        %v1369 = vpop.permute.xlu0 %1368
        %1370 = vrot.lane.b32.xlu0 %v513, 111
        %v1371 = vpop.permute.xlu0 %1370
        %1372 = vrot.lane.b32.xlu0 %v517, 111
        %v1373 = vpop.permute.xlu0 %1372
        %vm1374 = vcmp.lt.s32.totalorder %v544, 111
        %v1375 = vsel %vm1374, %v1351, %v1363
        %v1376 = vsel %vm1374, %v1353, %v1365
        %v1377 = vsel %vm1374, %v1355, %v1367
        %v1378 = vsel %vm1374, %v1357, %v1369
        %v1379 = vsel %vm1374, %v1359, %v1371
        %v1380 = vsel %vm1374, %v1361, %v1373
        %v1381 = vsel %vm1374, %v1363, %v1351
        %v1382 = vsel %vm1374, %v1365, %v1353
        %v1383 = vsel %vm1374, %v1367, %v1355
        %v1384 = vsel %vm1374, %v1369, %v1357
        %v1385 = vsel %vm1374, %v1371, %v1359
        %v1386 = vsel %vm1374, %v1373, %v1361
        %s1387 = scalar_lea.vmem [#allocation11], 16
        %v1388 = vld [vmem:[%s1387] ss:$8 sm:$0x3]
        %v1390 = vlaneseq
        %v1391 = vshrl.u32 %v1390, 7
        %v1392 = vsub.s32 0, %v1391
        %v1393 = vrot.slane %v1388, %v1392
        %v1394 = vlaneseq
        %v1395 = vshrl.u32 %v1394, 7
        %v1396 = vsub.s32 1, %v1395
        %v1397 = vrot.slane %v1388, %v1396
        %v1400 = vmul.f32 %v1375, %v1393
        %v1401 = vmul.f32 %v1381, %v1397
        %v1402 = vmul.f32 %v1376, %v1393
        %v1403 = vmul.f32 %v1382, %v1397
        %v1404 = vmul.f32 %v1377, %v1393
        %v1405 = vmul.f32 %v1383, %v1397
        %v1406 = vmul.f32 %v1378, %v1393
        %v1407 = vmul.f32 %v1384, %v1397
        %v1408 = vmul.f32 %v1379, %v1393
        %v1409 = vmul.f32 %v1385, %v1397
        %v1410 = vmul.f32 %v1380, %v1393
        %v1411 = vmul.f32 %v1386, %v1397
        %1412 = vset.pattern.permute.xlu0 8
        %1413 = vperm.xlu0 %1412, %v558
        %v1414 = vpop.permute.xlu0 %1413
        %1416 = vset.pattern.permute.xlu0 8
        %1417 = vperm.xlu0 %1416, %v559
        %v1418 = vpop.permute.xlu0 %1417
        %1420 = vset.pattern.permute.xlu0 8
        %1421 = vperm.xlu0 %1420, %v560
        %v1422 = vpop.permute.xlu0 %1421
        %1424 = vset.pattern.permute.xlu0 8
        %1425 = vperm.xlu0 %1424, %v561
        %v1426 = vpop.permute.xlu0 %1425
        %1428 = vset.pattern.permute.xlu0 8
        %1429 = vperm.xlu0 %1428, %v562
        %v1430 = vpop.permute.xlu0 %1429
        %1432 = vset.pattern.permute.xlu0 8
        %1433 = vperm.xlu0 %1432, %v563
        %v1434 = vpop.permute.xlu0 %1433
        %v1436 = vmul.f32 %v1400, %v1414
        %v1437 = vmul.f32 %v1401, %v1414
        %v1438 = vmul.f32 %v1402, %v1418
        %v1439 = vmul.f32 %v1403, %v1418
        %v1440 = vmul.f32 %v1404, %v1422
        %v1441 = vmul.f32 %v1405, %v1422
        %v1442 = vmul.f32 %v1406, %v1426
        %v1443 = vmul.f32 %v1407, %v1426
        %v1444 = vmul.f32 %v1408, %v1430
        %v1445 = vmul.f32 %v1409, %v1430
        %v1446 = vmul.f32 %v1410, %v1434
        %v1447 = vmul.f32 %v1411, %v1434
        %v1448 = vadd.f32 %v1338, %v1436
        %v1449 = vadd.f32 %v1339, %v1437
        %v1450 = vadd.f32 %v1340, %v1438
        %v1451 = vadd.f32 %v1341, %v1439
        %v1452 = vadd.f32 %v1342, %v1440
        %v1453 = vadd.f32 %v1343, %v1441
        %v1454 = vadd.f32 %v1344, %v1442
        %v1455 = vadd.f32 %v1345, %v1443
        %v1456 = vadd.f32 %v1346, %v1444
        %v1457 = vadd.f32 %v1347, %v1445
        %v1458 = vadd.f32 %v1348, %v1446
        %v1459 = vadd.f32 %v1349, %v1447
        %v1460 = vld [vmem:[#allocation10] sm:$0xff]
        %v1461 = vld [vmem:[#allocation10 + $0x8] sm:$0xff]
        %v1462 = vld [vmem:[#allocation10 + $0x10] sm:$0xff]
        %v1463 = vld [vmem:[#allocation10 + $0x18] sm:$0xff]
        %v1464 = vld [vmem:[#allocation10 + $0x20] sm:$0xff]
        %v1465 = vld [vmem:[#allocation10 + $0x28] sm:$0xff]
        %1467 = vset.pattern.permute.xlu0 0
        %1468 = vperm.xlu0 %1467, %v1460
        %v1469 = vpop.permute.xlu0 %1468
        %1472 = vset.pattern.permute.xlu0 0
        %1473 = vperm.xlu0 %1472, %v1461
        %v1474 = vpop.permute.xlu0 %1473
        %1477 = vset.pattern.permute.xlu0 0
        %1478 = vperm.xlu0 %1477, %v1462
        %v1479 = vpop.permute.xlu0 %1478
        %1482 = vset.pattern.permute.xlu0 0
        %1483 = vperm.xlu0 %1482, %v1463
        %v1484 = vpop.permute.xlu0 %1483
        %1487 = vset.pattern.permute.xlu0 0
        %1488 = vperm.xlu0 %1487, %v1464
        %v1489 = vpop.permute.xlu0 %1488
        %1492 = vset.pattern.permute.xlu0 0
        %1493 = vperm.xlu0 %1492, %v1465
        %v1494 = vpop.permute.xlu0 %1493
        %v1496 = vadd.f32 %v1448, %v1469
        %v1497 = vadd.f32 %v1449, %v1469
        %v1498 = vadd.f32 %v1450, %v1474
        %v1499 = vadd.f32 %v1451, %v1474
        %v1500 = vadd.f32 %v1452, %v1479
        %v1501 = vadd.f32 %v1453, %v1479
        %v1502 = vadd.f32 %v1454, %v1484
        %v1503 = vadd.f32 %v1455, %v1484
        %v1504 = vadd.f32 %v1456, %v1489
        %v1505 = vadd.f32 %v1457, %v1489
        %v1506 = vadd.f32 %v1458, %v1494
        %v1507 = vadd.f32 %v1459, %v1494
        %v1508 = vpack.c.bf16 %v1498, %v1496
        %v1509 = vpack.c.bf16 %v1499, %v1497
        %v1510 = vpack.c.bf16 %v1502, %v1500
        %v1511 = vpack.c.bf16 %v1503, %v1501
        %v1512 = vpack.c.bf16 %v1506, %v1504
        %v1513 = vpack.c.bf16 %v1507, %v1505
        %v1520 = vunpack.c.l.b16 %v1508
        %v1521 = vunpack.c.l.b16 %v1509
        %v1522 = vunpack.c.h.b16 %v1508
        %v1523 = vunpack.c.h.b16 %v1509
        %v1524 = vunpack.c.l.b16 %v1510
        %v1525 = vunpack.c.l.b16 %v1511
        %v1526 = vunpack.c.h.b16 %v1510
        %v1527 = vunpack.c.h.b16 %v1511
        %v1528 = vunpack.c.l.b16 %v1512
        %v1529 = vunpack.c.l.b16 %v1513
        %v1530 = vunpack.c.h.b16 %v1512
        %v1531 = vunpack.c.h.b16 %v1513
        %v1532 = vpack.c.b16 %v1521, %v1520
        %v1533 = vpack.c.b16 %v1523, %v1522
        %v1534 = vpack.c.b16 %v1525, %v1524
        %v1535 = vpack.c.b16 %v1527, %v1526
        %v1536 = vpack.c.b16 %v1529, %v1528
        %v1537 = vpack.c.b16 %v1531, %v1530
        %1544 = vst [vmem:[%s388] sm:$0xff] %v1532
        %1545 = vst [vmem:[%s388 + $0x8] sm:$0xff] %v1533
        %1546 = vst [vmem:[%s388 + $0x10] sm:$0xff] %v1534
        %1547 = vst [vmem:[%s388 + $0x18] sm:$0xff] %v1535
        %1548 = vst [vmem:[%s388 + $0x20] sm:$0xff] %v1536
        %1549 = vst [vmem:[%s388 + $0x28] sm:$0xff] %v1537
        %s1550 = sand.u32 %s199, 1
        %s1551 = scalar_lea.sflag [#allocation4], %s1550
        %s1552 = sand.u32 %s199, 1
        %s1553 = smul.addr %s1552, 48
        %s1554 = scalar_lea.vmem [#allocation13], %s1553
        // Predicated region
        $region69: #{tpu_custom_call.1} parent=43 // pred_check
          %p1555 = pneg %p209
        $region70: #{tpu_custom_call.1} parent=43 // pred_check_branch
          %1557 = sbr.rel (%p1555) target = $region72
        $region71: #{tpu_custom_call.1} parent=43 // pred_region
          %s1558 = smul.u32 6, %s31
          %s1560 = ssub.s32 768, 768
          %1561 = vsyncadd %s1551, %s1560
          %s1562 = smul.addr %s1558, 2
          %s1563 = smul.addr %s30, 12
          %s1564 = sadd.s32 %s1562, %s1563
          %s1565 = smul.addr %s1564, 64
          %s1566 = scalar_lea.hbm %s6, %s1565
          %s1567 = sshll.u32 %s1554, 4
          %s1568 = int_to_ptr.vmem [resolvable:$true] %s1567
          %1573 = dma.vmem_to_hbm [thread:$0]  %s1568, 768, %s1566, %s1551, 128, 128, 8
        $region72: #{tpu_custom_call.1} parent=43 // pred_fallthru
          _
      $region44: #{tpu_custom_call.1} parent=5 // pred_fallthru
        _
      %p1574 = scmp.le.s32.totalorder 2, %s21
      // Predicated region
      $region73: #{tpu_custom_call.1} parent=5 // pred_check
        %p1575 = pneg %p1574
      $region74: #{tpu_custom_call.1} parent=5 // pred_check_branch
        %1577 = sbr.rel (%p1575) target = $region76
      $region75: #{tpu_custom_call.1} parent=5 // pred_region
        %s1578 = ssub.s32 %s21, 2
        // Predicated region
        $region77: #{tpu_custom_call.1} parent=75 // pred_check
          %p1579 = pneg %p215
        $region78: #{tpu_custom_call.1} parent=75 // pred_check_branch
          %1581 = sbr.rel (%p1579) target = $region80
        $region79: #{tpu_custom_call.1} parent=75 // pred_region
          %s1582 = sand.u32 %s200, 1
          %s1583 = scalar_lea.sflag [#allocation4], %s1582
          %s1584 = sand.u32 %s200, 1
          %s1585 = smul.addr %s1584, 48
          %s1586 = scalar_lea.vmem [#allocation13], %s1585
          %1587 = dma.done %s1583, 768
        $region80: #{tpu_custom_call.1} parent=75 // pred_fallthru
          _
      $region76: #{tpu_custom_call.1} parent=5 // pred_fallthru
        _
    $region6: #{tpu_custom_call.1} parent=1 // loop_footer
      %s25 = sadd.s32 1, %s21
    $region7: #{tpu_custom_call.1} parent=1 // loop_footer_branch
      %20 = sbr.rel target = $region3
    $region8: #{tpu_custom_call.1} parent=1 // loop_exit
      _
    %1588 = vsyncpa [#allocation3], 1
    %s1589 = scalar_lea.sflag [#allocation3], 1
    %1590 = vsyncpa %s1589, 1
    %1591 = vsyncpa [#allocation6], 1
    %1592 = vsyncpa [#allocation9], 1
    %1593 = vsyncpa [#allocation12], 1
    %1594 = vsyncpa [#allocation4], 1
    %s1595 = scalar_lea.sflag [#allocation4], 1
    %1596 = vsyncpa %s1595, 1

</llo_original>
